<compile_context>
chip_gen: v5e
topology: v5e:2x2
jax: 0.10.0
libtpu: 0.0.40
codegen_flags: <defaults>
</compile_context>

<pallas_src>
import functools
import math

import jax
import jax.numpy as jnp
from jax.experimental import pallas as pl
from jax.experimental.pallas import tpu as pltpu


def _secm_attn_kernel(nhead, tn, kseq, d_model, compute_dtype,
                      x_ref, y_ref, wq_ref, wkv_ref, bq_ref, bkv_ref,
                      wo_ref, bo_ref, out_ref, attn_ref):
    """One grid step processes TN batch items (each a K x D attention problem).

    x_ref / y_ref / out_ref blocks: (TN*K, D)  -- flattened rows.
    attn_ref block:                 (TN, K, K) -- head-averaged attention map.
    Weights are pre-transposed to (in, out); K/V projection is fused (D, 2D).
    """
    dh = d_model // nhead
    scale = 1.0 / math.sqrt(dh)
    cd = compute_dtype

    x2 = x_ref[...].astype(cd)                       # (TN*K, D) queries
    y2 = y_ref[...].astype(cd)                       # (TN*K, D) keys / values

    # Fused projections as large flat MXU matmuls (f32 accumulation).
    q2 = jnp.dot(x2, wq_ref[...].astype(cd),
                 preferred_element_type=jnp.float32) + bq_ref[...]
    kv2 = jnp.dot(y2, wkv_ref[...].astype(cd),
                  preferred_element_type=jnp.float32) + bkv_ref[...]

    q2 = q2 * scale                                  # hoisted 1/sqrt(dh)
    q3 = q2.reshape(tn, kseq, d_model)
    k3 = kv2[:, :d_model].reshape(tn, kseq, d_model)
    v2 = kv2[:, d_model:]                            # (TN*K, D), flat for Wo fold
    wo = wo_ref[...].astype(cd)                      # (D, D)

    attn_acc = jnp.zeros((tn, kseq, kseq), jnp.float32)
    o3 = jnp.zeros((tn, kseq, d_model), jnp.float32)

    for h in range(nhead):                           # static, small head loop
        lo = h * dh
        qh = q3[:, :, lo:lo + dh].astype(cd)
        kh = k3[:, :, lo:lo + dh].astype(cd)
        s = jnp.einsum("nqd,nkd->nqk", qh, kh,
                       preferred_element_type=jnp.float32)       # (TN, K, K)
        s = s - jnp.max(s, axis=-1, keepdims=True)
        e = jnp.exp(s)
        p = e * pl.reciprocal(jnp.sum(e, axis=-1, keepdims=True), approx=True)
        attn_acc = attn_acc + p

        # Fold this head's output projection (no lane-concat of head outputs):
        # (P @ V_h) @ Wo_h  ==  P @ (V_h @ Wo_h), Wo_h = rows [lo, lo+dh) of Wo.
        vproj = jnp.dot(v2[:, lo:lo + dh].astype(cd), wo[lo:lo + dh, :],
                        preferred_element_type=jnp.float32)       # (TN*K, D)
        o3 = o3 + jnp.einsum("nqk,nkd->nqd",
                             p.astype(cd),
                             vproj.reshape(tn, kseq, d_model).astype(cd),
                             preferred_element_type=jnp.float32)

    out_ref[...] = (o3.reshape(tn * kseq, d_model)
                    + bo_ref[...]).astype(out_ref.dtype)
    attn_ref[...] = (attn_acc * (1.0 / nhead)).astype(attn_ref.dtype)


def _pick_tn(n):
    """Batch-tile size along N = B*T; keep >= 2 grid steps when possible."""
    tn = min(n, 128)
    if tn == n and n >= 2 and n % 2 == 0:
        tn = n // 2
    return max(tn, 1)


def secm_forward(x, params, nhead, y=None, compute_dtype=jnp.float32, tn=None):
    """Returns (out, map1) matching the PyTorch module:
       out:  (B*T, K, D)
       map1: (B, T, K, K) -- head-averaged attention weights."""
    B, T, Kseq, D = x.shape
    N = B * T
    xq = x.reshape(N * Kseq, D)
    yk = xq if y is None else y.reshape(N * Kseq, D)

    if tn is None:
        tn = _pick_tn(N)
    n_steps = pl.cdiv(N, tn)
    n_pad = n_steps * tn
    if n_pad != N:                                   # zero-pad to a full tile
        pad_rows = (n_pad - N) * Kseq
        xq = jnp.pad(xq, ((0, pad_rows), (0, 0)))
        yk = jnp.pad(yk, ((0, pad_rows), (0, 0)))

    # Glue: PyTorch stores (out, in); kernel wants (in, out). Fuse K and V.
    wq_t = params["wq"].T                                             # (D, D)
    wkv_t = jnp.concatenate([params["wk"].T, params["wv"].T], axis=1)  # (D, 2D)
    wo_t = params["wo"].T                                             # (D, D)
    bq = params["bq"].reshape(1, D)
    bkv = jnp.concatenate([params["bk"], params["bv"]]).reshape(1, 2 * D)
    bo = params["bo"].reshape(1, D)

    kernel = functools.partial(_secm_attn_kernel, nhead, tn, Kseq, D,
                               compute_dtype)
    row_spec = pl.BlockSpec((tn * Kseq, D), lambda n: (n, 0))

    def const_spec(shape):
        return pl.BlockSpec(shape, lambda n: (0, 0))

    out, attn = pl.pallas_call(
        kernel,
        grid=(n_steps,),
        in_specs=[
            row_spec,                                  # x (queries)
            row_spec,                                  # y (keys / values)
            const_spec((D, D)),                        # Wq
            const_spec((D, 2 * D)),                    # W_kv fused
            const_spec((1, D)),                        # bq
            const_spec((1, 2 * D)),                    # b_kv fused
            const_spec((D, D)),                        # Wo
            const_spec((1, D)),                        # bo
        ],
        out_specs=(
            pl.BlockSpec((tn * Kseq, D), lambda n: (n, 0)),
            pl.BlockSpec((tn, Kseq, Kseq), lambda n: (n, 0, 0)),
        ),
        out_shape=(
            jax.ShapeDtypeStruct((n_pad * Kseq, D), x.dtype),
            jax.ShapeDtypeStruct((n_pad, Kseq, Kseq), jnp.float32),
        ),
        compiler_params=pltpu.CompilerParams(
            dimension_semantics=("parallel",)),
    )(xq, yk, wq_t, wkv_t, bq, bkv, wo_t, bo)

    out = out[:N * Kseq].reshape(N, Kseq, D)
    attn = attn[:N].reshape(B, T, Kseq, Kseq)
    return out, attn


def secm_reference(x, params, nhead, y=None):
    """Plain-JAX replica of nn.MultiheadAttention (eval mode) for verification."""
    B, T, Kseq, D = x.shape
    N = B * T
    dh = D // nhead
    xq = x.reshape(N, Kseq, D)
    yk = xq if y is None else y.reshape(N, Kseq, D)
    q = xq @ params["wq"].T + params["bq"]
    k = yk @ params["wk"].T + params["bk"]
    v = yk @ params["wv"].T + params["bv"]

    def heads(t):
        return t.reshape(N, Kseq, nhead, dh).transpose(0, 2, 1, 3)

    qh, kh, vh = heads(q), heads(k), heads(v)
    s = jnp.einsum("nhqd,nhkd->nhqk", qh, kh) / math.sqrt(dh)
    p = jax.nn.softmax(s, axis=-1)
    o = jnp.einsum("nhqk,nhkd->nhqd", p, vh).transpose(0, 2, 1, 3).reshape(N, Kseq, D)
    o = o @ params["wo"].T + params["bo"]
    return o, p.mean(axis=1).reshape(B, T, Kseq, Kseq)


def init_params(key, d_model):
    """Deterministic synthetic parameters matching nn.MultiheadAttention shapes."""
    k1, k2, k3 = jax.random.split(key, 3)
    in_proj_weight = 0.1 * jax.random.normal(k1, (3 * d_model, d_model), jnp.float32)
    in_proj_bias = 0.05 * jax.random.normal(k2, (3 * d_model,), jnp.float32)
    out_proj_weight = 0.1 * jax.random.normal(k3, (d_model, d_model), jnp.float32)
    out_proj_bias = jnp.zeros((d_model,), jnp.float32)
    return {
        "wq": in_proj_weight[:d_model],
        "wk": in_proj_weight[d_model:2 * d_model],
        "wv": in_proj_weight[2 * d_model:],
        "bq": in_proj_bias[:d_model],
        "bk": in_proj_bias[d_model:2 * d_model],
        "bv": in_proj_bias[2 * d_model:],
        "wo": out_proj_weight,
        "bo": out_proj_bias,
    }


if __name__ == "__main__":
    B, T, K, D = 2, 4, 8, 32
    nhead = 4

    root = jax.random.PRNGKey(0)
    kx, ky, kp = jax.random.split(root, 3)
    x = jax.random.normal(kx, (B, T, K, D), jnp.float32)
    y = jax.random.normal(ky, (B, T, K, D), jnp.float32)
    params = init_params(kp, D)

    # Self-attention path (y=None), matching SECM.forward(x).
    out, attn_map = secm_forward(x, params, nhead)
    out = jax.block_until_ready(out)
    attn_map = jax.block_until_ready(attn_map)
    out_ref, map_ref = secm_reference(x, params, nhead)

    assert out.shape == (B * T, K, D)
    assert attn_map.shape == (B, T, K, K)
    # approx=True softmax reciprocal -> slightly looser than f32-exact 1e-4.
    assert jnp.allclose(out, out_ref, atol=2e-3, rtol=2e-3)
    assert jnp.allclose(attn_map, map_ref, atol=2e-3, rtol=2e-3)

    # Cross-attention path (y provided), matching SECM.forward(x, y).
    out_c, map_c = secm_forward(x, params, nhead, y=y)
    out_c = jax.block_until_ready(out_c)
    out_cr, map_cr = secm_reference(x, params, nhead, y=y)
    assert jnp.allclose(out_c, out_cr, atol=2e-3, rtol=2e-3)
    assert jnp.allclose(map_c, map_cr, atol=2e-3, rtol=2e-3)

    print("KERNEL_OK")
</pallas_src>

<mosaic_0001>
module attributes {stable_mosaic.version = 11 : i64} {
  func.func @_secm_attn_kernel(%arg0: i32, %arg1: memref<32x32xf32, #tpu.memory_space<vmem>>, %arg2: memref<32x32xf32, #tpu.memory_space<vmem>>, %arg3: memref<32x32xf32, #tpu.memory_space<vmem>>, %arg4: memref<32x64xf32, #tpu.memory_space<vmem>>, %arg5: memref<1x32xf32, #tpu.memory_space<vmem>>, %arg6: memref<1x64xf32, #tpu.memory_space<vmem>>, %arg7: memref<32x32xf32, #tpu.memory_space<vmem>>, %arg8: memref<1x32xf32, #tpu.memory_space<vmem>>, %arg9: memref<32x32xf32, #tpu.memory_space<vmem>>, %arg10: memref<4x8x8xf32, #tpu.memory_space<vmem>>) attributes {dimension_semantics = [#tpu.dimension_semantics<parallel>], iteration_bounds = array<i64: 2>, scalar_prefetch = 0 : i64, scratch_operands = 0 : i64, tpu.core_type = #tpu.core_type<tc>, window_params = [{transform_indices = @transform_0, window_bounds = array<i64: 32, 32>}, {transform_indices = @transform_1, window_bounds = array<i64: 32, 32>}, {pipeline_mode = #tpu.pipeline_mode<synchronous>, transform_indices = @transform_2, window_bounds = array<i64: 32, 32>}, {pipeline_mode = #tpu.pipeline_mode<synchronous>, transform_indices = @transform_3, window_bounds = array<i64: 32, 64>}, {pipeline_mode = #tpu.pipeline_mode<synchronous>, transform_indices = @transform_4, window_bounds = array<i64: 1, 32>}, {pipeline_mode = #tpu.pipeline_mode<synchronous>, transform_indices = @transform_5, window_bounds = array<i64: 1, 64>}, {pipeline_mode = #tpu.pipeline_mode<synchronous>, transform_indices = @transform_6, window_bounds = array<i64: 32, 32>}, {pipeline_mode = #tpu.pipeline_mode<synchronous>, transform_indices = @transform_7, window_bounds = array<i64: 1, 32>}, {transform_indices = @transform_8, window_bounds = array<i64: 32, 32>}, {transform_indices = @transform_9, window_bounds = array<i64: 4, 8, 8>}]} {
    %c0 = arith.constant 0 : index
    %c0_0 = arith.constant 0 : index
    %0 = vector.load %arg1[%c0, %c0_0] : memref<32x32xf32, #tpu.memory_space<vmem>>, vector<32x32xf32>
    %c0_1 = arith.constant 0 : index
    %c0_2 = arith.constant 0 : index
    %1 = vector.load %arg2[%c0_1, %c0_2] : memref<32x32xf32, #tpu.memory_space<vmem>>, vector<32x32xf32>
    %c0_3 = arith.constant 0 : index
    %c0_4 = arith.constant 0 : index
    %2 = vector.load %arg3[%c0_3, %c0_4] : memref<32x32xf32, #tpu.memory_space<vmem>>, vector<32x32xf32>
    %cst = arith.constant dense<0.000000e+00> : vector<32x32xf32>
    %3 = tpu.matmul %0, %2, %cst {dimension_numbers = #tpu.dot_dimension_numbers<[1], [0], [0], [1], [0, 0, 1, 1], [], []>} : vector<32x32xf32>, vector<32x32xf32>, vector<32x32xf32> -> vector<32x32xf32>
    %c0_5 = arith.constant 0 : index
    %c0_6 = arith.constant 0 : index
    %4 = vector.load %arg5[%c0_5, %c0_6] : memref<1x32xf32, #tpu.memory_space<vmem>>, vector<1x32xf32>
    %5 = vector.broadcast %4 : vector<1x32xf32> to vector<32x32xf32>
    %6 = arith.addf %3, %5 : vector<32x32xf32>
    %c0_7 = arith.constant 0 : index
    %c0_8 = arith.constant 0 : index
    %7 = vector.load %arg4[%c0_7, %c0_8] : memref<32x64xf32, #tpu.memory_space<vmem>>, vector<32x64xf32>
    %cst_9 = arith.constant dense<0.000000e+00> : vector<32x64xf32>
    %8 = tpu.matmul %1, %7, %cst_9 {dimension_numbers = #tpu.dot_dimension_numbers<[1], [0], [0], [1], [0, 0, 1, 1], [], []>} : vector<32x32xf32>, vector<32x64xf32>, vector<32x64xf32> -> vector<32x64xf32>
    %c0_10 = arith.constant 0 : index
    %c0_11 = arith.constant 0 : index
    %9 = vector.load %arg6[%c0_10, %c0_11] : memref<1x64xf32, #tpu.memory_space<vmem>>, vector<1x64xf32>
    %10 = vector.broadcast %9 : vector<1x64xf32> to vector<32x64xf32>
    %11 = arith.addf %8, %10 : vector<32x64xf32>
    %cst_12 = arith.constant 0.353553385 : f32
    %12 = vector.broadcast %cst_12 : f32 to vector<32x32xf32>
    %13 = arith.mulf %6, %12 : vector<32x32xf32>
    %14 = vector.shape_cast %13 : vector<32x32xf32> to vector<4x8x32xf32>
    %15 = vector.extract_strided_slice %11 {offsets = [0, 0], sizes = [32, 32], strides = [1, 1]} : vector<32x64xf32> to vector<32x32xf32>
    %16 = vector.shape_cast %15 : vector<32x32xf32> to vector<4x8x32xf32>
    %17 = vector.extract_strided_slice %11 {offsets = [0, 32], sizes = [32, 32], strides = [1, 1]} : vector<32x64xf32> to vector<32x32xf32>
    %c0_13 = arith.constant 0 : index
    %c0_14 = arith.constant 0 : index
    %18 = vector.load %arg7[%c0_13, %c0_14] : memref<32x32xf32, #tpu.memory_space<vmem>>, vector<32x32xf32>
    %cst_15 = arith.constant 0.000000e+00 : f32
    %19 = vector.broadcast %cst_15 : f32 to vector<4x8x8xf32>
    %cst_16 = arith.constant 0.000000e+00 : f32
    %20 = vector.broadcast %cst_16 : f32 to vector<4x8x32xf32>
    %21 = vector.extract_strided_slice %14 {offsets = [0, 0, 0], sizes = [4, 8, 8], strides = [1, 1, 1]} : vector<4x8x32xf32> to vector<4x8x8xf32>
    %22 = vector.extract_strided_slice %16 {offsets = [0, 0, 0], sizes = [4, 8, 8], strides = [1, 1, 1]} : vector<4x8x32xf32> to vector<4x8x8xf32>
    "tpu.trace_start"() <{level = 10 : i32, message = "nqd,nkd->nqk"}> : () -> ()
    %cst_17 = arith.constant dense<0.000000e+00> : vector<4x8x8xf32>
    %23 = tpu.matmul %21, %22, %cst_17 {dimension_numbers = #tpu.dot_dimension_numbers<[2], [2], [1], [1], [0, 0, 0, 1, 1, 1], [0], [0]>} : vector<4x8x8xf32>, vector<4x8x8xf32>, vector<4x8x8xf32> -> vector<4x8x8xf32>
    "tpu.trace_stop"() : () -> ()
    %cst_18 = arith.constant dense<0xFF800000> : vector<4x8xf32>
    %24 = vector.multi_reduction <maximumf>, %23, %cst_18 [2] : vector<4x8x8xf32> to vector<4x8xf32>
    %25 = vector.shape_cast %24 : vector<4x8xf32> to vector<4x8x1xf32>
    %26 = vector.broadcast %25 : vector<4x8x1xf32> to vector<4x8x8xf32>
    %27 = arith.subf %23, %26 : vector<4x8x8xf32>
    %28 = math.exp %27 : vector<4x8x8xf32>
    %cst_19 = arith.constant dense<0.000000e+00> : vector<4x8xf32>
    %29 = vector.multi_reduction <add>, %28, %cst_19 [2] : vector<4x8x8xf32> to vector<4x8xf32>
    %30 = vector.shape_cast %29 : vector<4x8xf32> to vector<4x8x1xf32>
    %31 = tpu.reciprocal %30 {approx = true} : vector<4x8x1xf32> -> vector<4x8x1xf32>
    %32 = vector.broadcast %31 : vector<4x8x1xf32> to vector<4x8x8xf32>
    %33 = arith.mulf %28, %32 : vector<4x8x8xf32>
    %34 = arith.addf %19, %33 : vector<4x8x8xf32>
    %35 = vector.extract_strided_slice %17 {offsets = [0, 0], sizes = [32, 8], strides = [1, 1]} : vector<32x32xf32> to vector<32x8xf32>
    %36 = vector.extract_strided_slice %18 {offsets = [0, 0], sizes = [8, 32], strides = [1, 1]} : vector<32x32xf32> to vector<8x32xf32>
    %cst_20 = arith.constant dense<0.000000e+00> : vector<32x32xf32>
    %37 = tpu.matmul %35, %36, %cst_20 {dimension_numbers = #tpu.dot_dimension_numbers<[1], [0], [0], [1], [0, 0, 1, 1], [], []>} : vector<32x8xf32>, vector<8x32xf32>, vector<32x32xf32> -> vector<32x32xf32>
    %38 = vector.shape_cast %37 : vector<32x32xf32> to vector<4x8x32xf32>
    "tpu.trace_start"() <{level = 10 : i32, message = "nqk,nkd->nqd"}> : () -> ()
    %cst_21 = arith.constant dense<0.000000e+00> : vector<4x8x32xf32>
    %39 = tpu.matmul %33, %38, %cst_21 {dimension_numbers = #tpu.dot_dimension_numbers<[2], [1], [1], [2], [0, 0, 0, 1, 1, 2], [0], [0]>} : vector<4x8x8xf32>, vector<4x8x32xf32>, vector<4x8x32xf32> -> vector<4x8x32xf32>
    "tpu.trace_stop"() : () -> ()
    %40 = arith.addf %20, %39 : vector<4x8x32xf32>
    %41 = vector.extract_strided_slice %14 {offsets = [0, 0, 8], sizes = [4, 8, 8], strides = [1, 1, 1]} : vector<4x8x32xf32> to vector<4x8x8xf32>
    %42 = vector.extract_strided_slice %16 {offsets = [0, 0, 8], sizes = [4, 8, 8], strides = [1, 1, 1]} : vector<4x8x32xf32> to vector<4x8x8xf32>
    "tpu.trace_start"() <{level = 10 : i32, message = "nqd,nkd->nqk"}> : () -> ()
    %cst_22 = arith.constant dense<0.000000e+00> : vector<4x8x8xf32>
    %43 = tpu.matmul %41, %42, %cst_22 {dimension_numbers = #tpu.dot_dimension_numbers<[2], [2], [1], [1], [0, 0, 0, 1, 1, 1], [0], [0]>} : vector<4x8x8xf32>, vector<4x8x8xf32>, vector<4x8x8xf32> -> vector<4x8x8xf32>
    "tpu.trace_stop"() : () -> ()
    %cst_23 = arith.constant dense<0xFF800000> : vector<4x8xf32>
    %44 = vector.multi_reduction <maximumf>, %43, %cst_23 [2] : vector<4x8x8xf32> to vector<4x8xf32>
    %45 = vector.shape_cast %44 : vector<4x8xf32> to vector<4x8x1xf32>
    %46 = vector.broadcast %45 : vector<4x8x1xf32> to vector<4x8x8xf32>
    %47 = arith.subf %43, %46 : vector<4x8x8xf32>
    %48 = math.exp %47 : vector<4x8x8xf32>
    %cst_24 = arith.constant dense<0.000000e+00> : vector<4x8xf32>
    %49 = vector.multi_reduction <add>, %48, %cst_24 [2] : vector<4x8x8xf32> to vector<4x8xf32>
    %50 = vector.shape_cast %49 : vector<4x8xf32> to vector<4x8x1xf32>
    %51 = tpu.reciprocal %50 {approx = true} : vector<4x8x1xf32> -> vector<4x8x1xf32>
    %52 = vector.broadcast %51 : vector<4x8x1xf32> to vector<4x8x8xf32>
    %53 = arith.mulf %48, %52 : vector<4x8x8xf32>
    %54 = arith.addf %34, %53 : vector<4x8x8xf32>
    %55 = vector.extract_strided_slice %17 {offsets = [0, 8], sizes = [32, 8], strides = [1, 1]} : vector<32x32xf32> to vector<32x8xf32>
    %56 = vector.extract_strided_slice %18 {offsets = [8, 0], sizes = [8, 32], strides = [1, 1]} : vector<32x32xf32> to vector<8x32xf32>
    %cst_25 = arith.constant dense<0.000000e+00> : vector<32x32xf32>
    %57 = tpu.matmul %55, %56, %cst_25 {dimension_numbers = #tpu.dot_dimension_numbers<[1], [0], [0], [1], [0, 0, 1, 1], [], []>} : vector<32x8xf32>, vector<8x32xf32>, vector<32x32xf32> -> vector<32x32xf32>
    %58 = vector.shape_cast %57 : vector<32x32xf32> to vector<4x8x32xf32>
    "tpu.trace_start"() <{level = 10 : i32, message = "nqk,nkd->nqd"}> : () -> ()
    %cst_26 = arith.constant dense<0.000000e+00> : vector<4x8x32xf32>
    %59 = tpu.matmul %53, %58, %cst_26 {dimension_numbers = #tpu.dot_dimension_numbers<[2], [1], [1], [2], [0, 0, 0, 1, 1, 2], [0], [0]>} : vector<4x8x8xf32>, vector<4x8x32xf32>, vector<4x8x32xf32> -> vector<4x8x32xf32>
    "tpu.trace_stop"() : () -> ()
    %60 = arith.addf %40, %59 : vector<4x8x32xf32>
    %61 = vector.extract_strided_slice %14 {offsets = [0, 0, 16], sizes = [4, 8, 8], strides = [1, 1, 1]} : vector<4x8x32xf32> to vector<4x8x8xf32>
    %62 = vector.extract_strided_slice %16 {offsets = [0, 0, 16], sizes = [4, 8, 8], strides = [1, 1, 1]} : vector<4x8x32xf32> to vector<4x8x8xf32>
    "tpu.trace_start"() <{level = 10 : i32, message = "nqd,nkd->nqk"}> : () -> ()
    %cst_27 = arith.constant dense<0.000000e+00> : vector<4x8x8xf32>
    %63 = tpu.matmul %61, %62, %cst_27 {dimension_numbers = #tpu.dot_dimension_numbers<[2], [2], [1], [1], [0, 0, 0, 1, 1, 1], [0], [0]>} : vector<4x8x8xf32>, vector<4x8x8xf32>, vector<4x8x8xf32> -> vector<4x8x8xf32>
    "tpu.trace_stop"() : () -> ()
    %cst_28 = arith.constant dense<0xFF800000> : vector<4x8xf32>
    %64 = vector.multi_reduction <maximumf>, %63, %cst_28 [2] : vector<4x8x8xf32> to vector<4x8xf32>
    %65 = vector.shape_cast %64 : vector<4x8xf32> to vector<4x8x1xf32>
    %66 = vector.broadcast %65 : vector<4x8x1xf32> to vector<4x8x8xf32>
    %67 = arith.subf %63, %66 : vector<4x8x8xf32>
    %68 = math.exp %67 : vector<4x8x8xf32>
    %cst_29 = arith.constant dense<0.000000e+00> : vector<4x8xf32>
    %69 = vector.multi_reduction <add>, %68, %cst_29 [2] : vector<4x8x8xf32> to vector<4x8xf32>
    %70 = vector.shape_cast %69 : vector<4x8xf32> to vector<4x8x1xf32>
    %71 = tpu.reciprocal %70 {approx = true} : vector<4x8x1xf32> -> vector<4x8x1xf32>
    %72 = vector.broadcast %71 : vector<4x8x1xf32> to vector<4x8x8xf32>
    %73 = arith.mulf %68, %72 : vector<4x8x8xf32>
    %74 = arith.addf %54, %73 : vector<4x8x8xf32>
    %75 = vector.extract_strided_slice %17 {offsets = [0, 16], sizes = [32, 8], strides = [1, 1]} : vector<32x32xf32> to vector<32x8xf32>
    %76 = vector.extract_strided_slice %18 {offsets = [16, 0], sizes = [8, 32], strides = [1, 1]} : vector<32x32xf32> to vector<8x32xf32>
    %cst_30 = arith.constant dense<0.000000e+00> : vector<32x32xf32>
    %77 = tpu.matmul %75, %76, %cst_30 {dimension_numbers = #tpu.dot_dimension_numbers<[1], [0], [0], [1], [0, 0, 1, 1], [], []>} : vector<32x8xf32>, vector<8x32xf32>, vector<32x32xf32> -> vector<32x32xf32>
    %78 = vector.shape_cast %77 : vector<32x32xf32> to vector<4x8x32xf32>
    "tpu.trace_start"() <{level = 10 : i32, message = "nqk,nkd->nqd"}> : () -> ()
    %cst_31 = arith.constant dense<0.000000e+00> : vector<4x8x32xf32>
    %79 = tpu.matmul %73, %78, %cst_31 {dimension_numbers = #tpu.dot_dimension_numbers<[2], [1], [1], [2], [0, 0, 0, 1, 1, 2], [0], [0]>} : vector<4x8x8xf32>, vector<4x8x32xf32>, vector<4x8x32xf32> -> vector<4x8x32xf32>
    "tpu.trace_stop"() : () -> ()
    %80 = arith.addf %60, %79 : vector<4x8x32xf32>
    %81 = vector.extract_strided_slice %14 {offsets = [0, 0, 24], sizes = [4, 8, 8], strides = [1, 1, 1]} : vector<4x8x32xf32> to vector<4x8x8xf32>
    %82 = vector.extract_strided_slice %16 {offsets = [0, 0, 24], sizes = [4, 8, 8], strides = [1, 1, 1]} : vector<4x8x32xf32> to vector<4x8x8xf32>
    "tpu.trace_start"() <{level = 10 : i32, message = "nqd,nkd->nqk"}> : () -> ()
    %cst_32 = arith.constant dense<0.000000e+00> : vector<4x8x8xf32>
    %83 = tpu.matmul %81, %82, %cst_32 {dimension_numbers = #tpu.dot_dimension_numbers<[2], [2], [1], [1], [0, 0, 0, 1, 1, 1], [0], [0]>} : vector<4x8x8xf32>, vector<4x8x8xf32>, vector<4x8x8xf32> -> vector<4x8x8xf32>
    "tpu.trace_stop"() : () -> ()
    %cst_33 = arith.constant dense<0xFF800000> : vector<4x8xf32>
    %84 = vector.multi_reduction <maximumf>, %83, %cst_33 [2] : vector<4x8x8xf32> to vector<4x8xf32>
    %85 = vector.shape_cast %84 : vector<4x8xf32> to vector<4x8x1xf32>
    %86 = vector.broadcast %85 : vector<4x8x1xf32> to vector<4x8x8xf32>
    %87 = arith.subf %83, %86 : vector<4x8x8xf32>
    %88 = math.exp %87 : vector<4x8x8xf32>
    %cst_34 = arith.constant dense<0.000000e+00> : vector<4x8xf32>
    %89 = vector.multi_reduction <add>, %88, %cst_34 [2] : vector<4x8x8xf32> to vector<4x8xf32>
    %90 = vector.shape_cast %89 : vector<4x8xf32> to vector<4x8x1xf32>
    %91 = tpu.reciprocal %90 {approx = true} : vector<4x8x1xf32> -> vector<4x8x1xf32>
    %92 = vector.broadcast %91 : vector<4x8x1xf32> to vector<4x8x8xf32>
    %93 = arith.mulf %88, %92 : vector<4x8x8xf32>
    %94 = arith.addf %74, %93 : vector<4x8x8xf32>
    %95 = vector.extract_strided_slice %17 {offsets = [0, 24], sizes = [32, 8], strides = [1, 1]} : vector<32x32xf32> to vector<32x8xf32>
    %96 = vector.extract_strided_slice %18 {offsets = [24, 0], sizes = [8, 32], strides = [1, 1]} : vector<32x32xf32> to vector<8x32xf32>
    %cst_35 = arith.constant dense<0.000000e+00> : vector<32x32xf32>
    %97 = tpu.matmul %95, %96, %cst_35 {dimension_numbers = #tpu.dot_dimension_numbers<[1], [0], [0], [1], [0, 0, 1, 1], [], []>} : vector<32x8xf32>, vector<8x32xf32>, vector<32x32xf32> -> vector<32x32xf32>
    %98 = vector.shape_cast %97 : vector<32x32xf32> to vector<4x8x32xf32>
    "tpu.trace_start"() <{level = 10 : i32, message = "nqk,nkd->nqd"}> : () -> ()
    %cst_36 = arith.constant dense<0.000000e+00> : vector<4x8x32xf32>
    %99 = tpu.matmul %93, %98, %cst_36 {dimension_numbers = #tpu.dot_dimension_numbers<[2], [1], [1], [2], [0, 0, 0, 1, 1, 2], [0], [0]>} : vector<4x8x8xf32>, vector<4x8x32xf32>, vector<4x8x32xf32> -> vector<4x8x32xf32>
    "tpu.trace_stop"() : () -> ()
    %100 = arith.addf %80, %99 : vector<4x8x32xf32>
    %101 = vector.shape_cast %100 : vector<4x8x32xf32> to vector<32x32xf32>
    %c0_37 = arith.constant 0 : index
    %c0_38 = arith.constant 0 : index
    %102 = vector.load %arg8[%c0_37, %c0_38] : memref<1x32xf32, #tpu.memory_space<vmem>>, vector<1x32xf32>
    %103 = vector.broadcast %102 : vector<1x32xf32> to vector<32x32xf32>
    %104 = arith.addf %101, %103 : vector<32x32xf32>
    %c0_39 = arith.constant 0 : index
    %c0_40 = arith.constant 0 : index
    %105 = vector.load %arg9[%c0_39, %c0_40] : memref<32x32xf32, #tpu.memory_space<vmem>>, vector<32x32xf32>
    tpu.vector_store %arg9[%c0_39, %c0_40], %104 {strides = array<i32>} : memref<32x32xf32, #tpu.memory_space<vmem>>, vector<32x32xf32>,
    %cst_41 = arith.constant 2.500000e-01 : f32
    %106 = vector.broadcast %cst_41 : f32 to vector<4x8x8xf32>
    %107 = arith.mulf %94, %106 : vector<4x8x8xf32>
    %c0_42 = arith.constant 0 : index
    %c0_43 = arith.constant 0 : index
    %c0_44 = arith.constant 0 : index
    %108 = vector.load %arg10[%c0_42, %c0_43, %c0_44] : memref<4x8x8xf32, #tpu.memory_space<vmem>>, vector<4x8x8xf32>
    tpu.vector_store %arg10[%c0_42, %c0_43, %c0_44], %107 {strides = array<i32>} : memref<4x8x8xf32, #tpu.memory_space<vmem>>, vector<4x8x8xf32>,
    return
  }
  func.func @transform_0(%arg0: i32) -> (i32, i32) {
    %c0_i32 = arith.constant 0 : i32
    %c0_i32_0 = arith.constant 0 : i32
    return %arg0, %c0_i32 : i32, i32
  }
  func.func @transform_1(%arg0: i32) -> (i32, i32) {
    %c0_i32 = arith.constant 0 : i32
    %c0_i32_0 = arith.constant 0 : i32
    return %arg0, %c0_i32 : i32, i32
  }
  func.func @transform_2(%arg0: i32) -> (i32, i32) {
    %c0_i32 = arith.constant 0 : i32
    %c0_i32_0 = arith.constant 0 : i32
    %c0_i32_1 = arith.constant 0 : i32
    return %c0_i32, %c0_i32_0 : i32, i32
  }
  func.func @transform_3(%arg0: i32) -> (i32, i32) {
    %c0_i32 = arith.constant 0 : i32
    %c0_i32_0 = arith.constant 0 : i32
    %c0_i32_1 = arith.constant 0 : i32
    return %c0_i32, %c0_i32_0 : i32, i32
  }
  func.func @transform_4(%arg0: i32) -> (i32, i32) {
    %c0_i32 = arith.constant 0 : i32
    %c0_i32_0 = arith.constant 0 : i32
    %c0_i32_1 = arith.constant 0 : i32
    return %c0_i32, %c0_i32_0 : i32, i32
  }
  func.func @transform_5(%arg0: i32) -> (i32, i32) {
    %c0_i32 = arith.constant 0 : i32
    %c0_i32_0 = arith.constant 0 : i32
    %c0_i32_1 = arith.constant 0 : i32
    return %c0_i32, %c0_i32_0 : i32, i32
  }
  func.func @transform_6(%arg0: i32) -> (i32, i32) {
    %c0_i32 = arith.constant 0 : i32
    %c0_i32_0 = arith.constant 0 : i32
    %c0_i32_1 = arith.constant 0 : i32
    return %c0_i32, %c0_i32_0 : i32, i32
  }
  func.func @transform_7(%arg0: i32) -> (i32, i32) {
    %c0_i32 = arith.constant 0 : i32
    %c0_i32_0 = arith.constant 0 : i32
    %c0_i32_1 = arith.constant 0 : i32
    return %c0_i32, %c0_i32_0 : i32, i32
  }
  func.func @transform_8(%arg0: i32) -> (i32, i32) {
    %c0_i32 = arith.constant 0 : i32
    %c0_i32_0 = arith.constant 0 : i32
    return %arg0, %c0_i32 : i32, i32
  }
  func.func @transform_9(%arg0: i32) -> (i32, i32, i32) {
    %c0_i32 = arith.constant 0 : i32
    %c0_i32_0 = arith.constant 0 : i32
    %c0_i32_1 = arith.constant 0 : i32
    return %arg0, %c0_i32, %c0_i32_0 : i32, i32, i32
  }
}

</mosaic_0001>

<llo_original>
// kernel: tpu_custom_call.1
$region0: #{tpu_custom_call.1}
  #allocation0 [shape = 'u32[]', space=smem, size = 0x4, offset = 0x4, fixed_abs, tag = 'smem constant byte address 0x4 - core index']
  #allocation1 [shape = 'u32[72,128]{1,0:T(1,128)}', space=vmem, size = 0x9000, scoped, tag = 'internal scratch']
  %s0 = inlined_call_operand.vmem [shape: f32[64,32], index: 0, kind: input, shape index: {}]
  %s1 = inlined_call_operand.vmem [shape: f32[64,32], index: 1, kind: input, shape index: {}]
  %s2 = inlined_call_operand.vmem [shape: f32[32,32], index: 2, kind: input, shape index: {}]
  %s3 = inlined_call_operand.vmem [shape: f32[32,64], index: 3, kind: input, shape index: {}]
  %s4 = inlined_call_operand.vmem [shape: f32[1,32], index: 4, kind: input, shape index: {}]
  %s5 = inlined_call_operand.vmem [shape: f32[1,64], index: 5, kind: input, shape index: {}]
  %s6 = inlined_call_operand.vmem [shape: f32[32,32], index: 6, kind: input, shape index: {}]
  %s7 = inlined_call_operand.vmem [shape: f32[1,32], index: 7, kind: input, shape index: {}]
  %s8 = inlined_call_operand.vmem [shape: f32[64,32], index: 8, kind: output, shape index: {0}]
  %s9 = inlined_call_operand.hbm [shape: f32[8,8,8], index: 9, kind: output, shape index: {1}]
  %10 = xla_tuple %s8, %s9
  %s11 = sld [smem:[#allocation0]]
  $region73: #{tpu_custom_call.1} parent=0
    _
  %s13 = ssub.s32 1, %s11
  %s14 = scalar_select 0, %s13, %s11
  $region1: #{tpu_custom_call.1} parent=0
    #allocation2 [shape = 'u8[32768]{0}', space=vmem, size = 0x8000, scoped, tag = 'output window, operand 1']
    #allocation3 [shape = 's32[2]{0}', space=sflag, size = 0x8, scoped, tag = 'scoped memory for tpu_custom_call.1']
    %15 = vsyncpa [#allocation3], 0
    %s16 = scalar_lea.sflag [#allocation3], 1
    %17 = vsyncpa %s16, 0
    loop: start=0, step=1, limit=4
    $region2: #{tpu_custom_call.1} parent=1 // loop_pre_header
      _
    $region3: #{tpu_custom_call.1} parent=1 // loop_header
      %s19 = sphi 0, %s23
      %p20 = scmp.ge.s32.totalorder %s19, 4
      %s29 = sphi 0, %s31
      %s32 = sphi 0, %s29
      %s33 = sphi 0, %s32
      %s49 = sphi 0, %s33
      %s55 = sphi 0, %s57
      %s58 = sphi 0, %s55
      %s59 = sphi 0, %s58
      %s75 = sphi 0, %s59
      %s79 = sphi 0, %s79
      %s81 = sphi 0, %s79
      %s82 = sphi 0, %s81
      %s96 = sphi 0, %s82
      %s100 = sphi 0, %s100
      %s102 = sphi 0, %s100
      %s103 = sphi 0, %s102
      %s117 = sphi 0, %s103
      %s121 = sphi 0, %s121
      %s123 = sphi 0, %s121
      %s124 = sphi 0, %s123
      %s138 = sphi 0, %s124
      %s142 = sphi 0, %s142
      %s144 = sphi 0, %s142
      %s145 = sphi 0, %s144
      %s159 = sphi 0, %s145
      %s163 = sphi 0, %s163
      %s165 = sphi 0, %s163
      %s166 = sphi 0, %s165
      %s180 = sphi 0, %s166
      %s184 = sphi 0, %s184
      %s186 = sphi 0, %s184
      %s187 = sphi 0, %s186
      %s201 = sphi 0, %s187
      %s207 = sphi 0, %s209
      %s210 = sphi 0, %s207
      %s211 = sphi 0, %s210
      %s227 = sphi 0, %s211
      %s233 = sphi 0, %s235
      %s236 = sphi 0, %s233
      %s237 = sphi 0, %s236
      %s253 = sphi 0, %s237
    $region4: #{tpu_custom_call.1} parent=1 // loop_header_branch
      %22 = sbr.rel (%p20) target = $region8
    $region5: #{tpu_custom_call.1} parent=1 // loop_body
      %s24 = ssub.s32 %s19, 1
      %s25 = ssub.s32 %s19, 2
      %s26 = sadd.s32 %s19, 1
      %s27 = ssub.s32 %s19, %s26
      %p28 = scmp.eq.s32.totalorder %s27, 0
      %s30 = sadd.s32 %s29, 1
      %s31 = scalar_select %p28, %s29, %s30
      %p34 = pneg %p28
      %p35 = scmp.eq.s32.totalorder %s19, 1
      %p36 = por %p34, %p35
      %p37 = scmp.ne.s32.totalorder %s29, %s32
      %p38 = scmp.eq.s32.totalorder %s19, 0
      %p39 = por %p37, %p38
      %p40 = scmp.ne.s32.totalorder %s29, %s32
      %p41 = scmp.eq.s32.totalorder %s24, 1
      %p42 = por %p40, %p41
      %p43 = scmp.ne.s32.totalorder %s32, %s33
      %p44 = scmp.eq.s32.totalorder %s24, 0
      %p45 = por %p43, %p44
      %p46 = scmp.ne.s32.totalorder %s32, %s33
      %p47 = scmp.eq.s32.totalorder %s25, 1
      %p48 = por %p46, %p47
      %p50 = scmp.ne.s32.totalorder %s33, %s49
      %p51 = scmp.eq.s32.totalorder %s25, 0
      %p52 = por %p50, %p51
      %s53 = ssub.s32 %s19, %s26
      %p54 = scmp.eq.s32.totalorder %s53, 0
      %s56 = sadd.s32 %s55, 1
      %s57 = scalar_select %p54, %s55, %s56
      %p60 = pneg %p54
      %p61 = scmp.eq.s32.totalorder %s19, 1
      %p62 = por %p60, %p61
      %p63 = scmp.ne.s32.totalorder %s55, %s58
      %p64 = scmp.eq.s32.totalorder %s19, 0
      %p65 = por %p63, %p64
      %p66 = scmp.ne.s32.totalorder %s55, %s58
      %p67 = scmp.eq.s32.totalorder %s24, 1
      %p68 = por %p66, %p67
      %p69 = scmp.ne.s32.totalorder %s58, %s59
      %p70 = scmp.eq.s32.totalorder %s24, 0
      %p71 = por %p69, %p70
      %p72 = scmp.ne.s32.totalorder %s58, %s59
      %p73 = scmp.eq.s32.totalorder %s25, 1
      %p74 = por %p72, %p73
      %p76 = scmp.ne.s32.totalorder %s59, %s75
      %p77 = scmp.eq.s32.totalorder %s25, 0
      %p78 = por %p76, %p77
      %s80 = sadd.s32 %s79, 1
      %p83 = scmp.eq.s32.totalorder %s19, 1
      %p84 = scmp.ne.s32.totalorder %s79, %s81
      %p85 = scmp.eq.s32.totalorder %s19, 0
      %p86 = por %p84, %p85
      %p87 = scmp.ne.s32.totalorder %s79, %s81
      %p88 = scmp.eq.s32.totalorder %s24, 1
      %p89 = por %p87, %p88
      %p90 = scmp.ne.s32.totalorder %s81, %s82
      %p91 = scmp.eq.s32.totalorder %s24, 0
      %p92 = por %p90, %p91
      %p93 = scmp.ne.s32.totalorder %s81, %s82
      %p94 = scmp.eq.s32.totalorder %s25, 1
      %p95 = por %p93, %p94
      %p97 = scmp.ne.s32.totalorder %s82, %s96
      %p98 = scmp.eq.s32.totalorder %s25, 0
      %p99 = por %p97, %p98
      %s101 = sadd.s32 %s100, 1
      %p104 = scmp.eq.s32.totalorder %s19, 1
      %p105 = scmp.ne.s32.totalorder %s100, %s102
      %p106 = scmp.eq.s32.totalorder %s19, 0
      %p107 = por %p105, %p106
      %p108 = scmp.ne.s32.totalorder %s100, %s102
      %p109 = scmp.eq.s32.totalorder %s24, 1
      %p110 = por %p108, %p109
      %p111 = scmp.ne.s32.totalorder %s102, %s103
      %p112 = scmp.eq.s32.totalorder %s24, 0
      %p113 = por %p111, %p112
      %p114 = scmp.ne.s32.totalorder %s102, %s103
      %p115 = scmp.eq.s32.totalorder %s25, 1
      %p116 = por %p114, %p115
      %p118 = scmp.ne.s32.totalorder %s103, %s117
      %p119 = scmp.eq.s32.totalorder %s25, 0
      %p120 = por %p118, %p119
      %s122 = sadd.s32 %s121, 1
      %p125 = scmp.eq.s32.totalorder %s19, 1
      %p126 = scmp.ne.s32.totalorder %s121, %s123
      %p127 = scmp.eq.s32.totalorder %s19, 0
      %p128 = por %p126, %p127
      %p129 = scmp.ne.s32.totalorder %s121, %s123
      %p130 = scmp.eq.s32.totalorder %s24, 1
      %p131 = por %p129, %p130
      %p132 = scmp.ne.s32.totalorder %s123, %s124
      %p133 = scmp.eq.s32.totalorder %s24, 0
      %p134 = por %p132, %p133
      %p135 = scmp.ne.s32.totalorder %s123, %s124
      %p136 = scmp.eq.s32.totalorder %s25, 1
      %p137 = por %p135, %p136
      %p139 = scmp.ne.s32.totalorder %s124, %s138
      %p140 = scmp.eq.s32.totalorder %s25, 0
      %p141 = por %p139, %p140
      %s143 = sadd.s32 %s142, 1
      %p146 = scmp.eq.s32.totalorder %s19, 1
      %p147 = scmp.ne.s32.totalorder %s142, %s144
      %p148 = scmp.eq.s32.totalorder %s19, 0
      %p149 = por %p147, %p148
      %p150 = scmp.ne.s32.totalorder %s142, %s144
      %p151 = scmp.eq.s32.totalorder %s24, 1
      %p152 = por %p150, %p151
      %p153 = scmp.ne.s32.totalorder %s144, %s145
      %p154 = scmp.eq.s32.totalorder %s24, 0
      %p155 = por %p153, %p154
      %p156 = scmp.ne.s32.totalorder %s144, %s145
      %p157 = scmp.eq.s32.totalorder %s25, 1
      %p158 = por %p156, %p157
      %p160 = scmp.ne.s32.totalorder %s145, %s159
      %p161 = scmp.eq.s32.totalorder %s25, 0
      %p162 = por %p160, %p161
      %s164 = sadd.s32 %s163, 1
      %p167 = scmp.eq.s32.totalorder %s19, 1
      %p168 = scmp.ne.s32.totalorder %s163, %s165
      %p169 = scmp.eq.s32.totalorder %s19, 0
      %p170 = por %p168, %p169
      %p171 = scmp.ne.s32.totalorder %s163, %s165
      %p172 = scmp.eq.s32.totalorder %s24, 1
      %p173 = por %p171, %p172
      %p174 = scmp.ne.s32.totalorder %s165, %s166
      %p175 = scmp.eq.s32.totalorder %s24, 0
      %p176 = por %p174, %p175
      %p177 = scmp.ne.s32.totalorder %s165, %s166
      %p178 = scmp.eq.s32.totalorder %s25, 1
      %p179 = por %p177, %p178
      %p181 = scmp.ne.s32.totalorder %s166, %s180
      %p182 = scmp.eq.s32.totalorder %s25, 0
      %p183 = por %p181, %p182
      %s185 = sadd.s32 %s184, 1
      %p188 = scmp.eq.s32.totalorder %s19, 1
      %p189 = scmp.ne.s32.totalorder %s184, %s186
      %p190 = scmp.eq.s32.totalorder %s19, 0
      %p191 = por %p189, %p190
      %p192 = scmp.ne.s32.totalorder %s184, %s186
      %p193 = scmp.eq.s32.totalorder %s24, 1
      %p194 = por %p192, %p193
      %p195 = scmp.ne.s32.totalorder %s186, %s187
      %p196 = scmp.eq.s32.totalorder %s24, 0
      %p197 = por %p195, %p196
      %p198 = scmp.ne.s32.totalorder %s186, %s187
      %p199 = scmp.eq.s32.totalorder %s25, 1
      %p200 = por %p198, %p199
      %p202 = scmp.ne.s32.totalorder %s187, %s201
      %p203 = scmp.eq.s32.totalorder %s25, 0
      %p204 = por %p202, %p203
      %s205 = ssub.s32 %s19, %s26
      %p206 = scmp.eq.s32.totalorder %s205, 0
      %s208 = sadd.s32 %s207, 1
      %s209 = scalar_select %p206, %s207, %s208
      %p212 = pneg %p206
      %p213 = scmp.eq.s32.totalorder %s19, 1
      %p214 = por %p212, %p213
      %p215 = scmp.ne.s32.totalorder %s207, %s210
      %p216 = scmp.eq.s32.totalorder %s19, 0
      %p217 = por %p215, %p216
      %p218 = scmp.ne.s32.totalorder %s207, %s210
      %p219 = scmp.eq.s32.totalorder %s24, 1
      %p220 = por %p218, %p219
      %p221 = scmp.ne.s32.totalorder %s210, %s211
      %p222 = scmp.eq.s32.totalorder %s24, 0
      %p223 = por %p221, %p222
      %p224 = scmp.ne.s32.totalorder %s210, %s211
      %p225 = scmp.eq.s32.totalorder %s25, 1
      %p226 = por %p224, %p225
      %p228 = scmp.ne.s32.totalorder %s211, %s227
      %p229 = scmp.eq.s32.totalorder %s25, 0
      %p230 = por %p228, %p229
      %s231 = ssub.s32 %s19, %s26
      %p232 = scmp.eq.s32.totalorder %s231, 0
      %s234 = sadd.s32 %s233, 1
      %s235 = scalar_select %p232, %s233, %s234
      %p238 = pneg %p232
      %p239 = scmp.eq.s32.totalorder %s19, 1
      %p240 = por %p238, %p239
      %p241 = scmp.ne.s32.totalorder %s233, %s236
      %p242 = scmp.eq.s32.totalorder %s19, 0
      %p243 = por %p241, %p242
      %p244 = scmp.ne.s32.totalorder %s233, %s236
      %p245 = scmp.eq.s32.totalorder %s24, 1
      %p246 = por %p244, %p245
      %p247 = scmp.ne.s32.totalorder %s236, %s237
      %p248 = scmp.eq.s32.totalorder %s24, 0
      %p249 = por %p247, %p248
      %p250 = scmp.ne.s32.totalorder %s236, %s237
      %p251 = scmp.eq.s32.totalorder %s25, 1
      %p252 = por %p250, %p251
      %p254 = scmp.ne.s32.totalorder %s237, %s253
      %p255 = scmp.eq.s32.totalorder %s25, 0
      %p256 = por %p254, %p255
      %p257 = scmp.le.s32.totalorder 1, %s19
      %p258 = scmp.lt.s32.totalorder %s19, 3
      %p259 = pnand %p257, %p258
      %p260 = pneg %p259
      // Predicated region
      $region9: #{tpu_custom_call.1} parent=5 // pred_check
        _
      $region10: #{tpu_custom_call.1} parent=5 // pred_check_branch
        %262 = sbr.rel (%p259) target = $region12
      $region11: #{tpu_custom_call.1} parent=5 // pred_region
        %s263 = ssub.s32 %s19, 1
        // Predicated region
        $region13: #{tpu_custom_call.1} parent=11 // pred_check
          %p264 = pneg %p92
        $region14: #{tpu_custom_call.1} parent=11 // pred_check_branch
          %266 = sbr.rel (%p264) target = $region16
        $region15: #{tpu_custom_call.1} parent=11 // pred_region
          _
        $region16: #{tpu_custom_call.1} parent=11 // pred_fallthru
          _
        // Predicated region
        $region17: #{tpu_custom_call.1} parent=11 // pred_check
          %p267 = pneg %p113
        $region18: #{tpu_custom_call.1} parent=11 // pred_check_branch
          %269 = sbr.rel (%p267) target = $region20
        $region19: #{tpu_custom_call.1} parent=11 // pred_region
          _
        $region20: #{tpu_custom_call.1} parent=11 // pred_fallthru
          _
        // Predicated region
        $region21: #{tpu_custom_call.1} parent=11 // pred_check
          %p270 = pneg %p134
        $region22: #{tpu_custom_call.1} parent=11 // pred_check_branch
          %272 = sbr.rel (%p270) target = $region24
        $region23: #{tpu_custom_call.1} parent=11 // pred_region
          _
        $region24: #{tpu_custom_call.1} parent=11 // pred_fallthru
          _
        // Predicated region
        $region25: #{tpu_custom_call.1} parent=11 // pred_check
          %p273 = pneg %p155
        $region26: #{tpu_custom_call.1} parent=11 // pred_check_branch
          %275 = sbr.rel (%p273) target = $region28
        $region27: #{tpu_custom_call.1} parent=11 // pred_region
          _
        $region28: #{tpu_custom_call.1} parent=11 // pred_fallthru
          _
        // Predicated region
        $region29: #{tpu_custom_call.1} parent=11 // pred_check
          %p276 = pneg %p176
        $region30: #{tpu_custom_call.1} parent=11 // pred_check_branch
          %278 = sbr.rel (%p276) target = $region32
        $region31: #{tpu_custom_call.1} parent=11 // pred_region
          _
        $region32: #{tpu_custom_call.1} parent=11 // pred_fallthru
          _
        // Predicated region
        $region33: #{tpu_custom_call.1} parent=11 // pred_check
          %p279 = pneg %p197
        $region34: #{tpu_custom_call.1} parent=11 // pred_check_branch
          %281 = sbr.rel (%p279) target = $region36
        $region35: #{tpu_custom_call.1} parent=11 // pred_region
          _
        $region36: #{tpu_custom_call.1} parent=11 // pred_fallthru
          _
      $region12: #{tpu_custom_call.1} parent=5 // pred_fallthru
        _
      %p282 = scmp.lt.s32.totalorder %s19, 2
      // Predicated region
      $region37: #{tpu_custom_call.1} parent=5 // pred_check
        %p283 = pneg %p282
      $region38: #{tpu_custom_call.1} parent=5 // pred_check_branch
        %285 = sbr.rel (%p283) target = $region40
      $region39: #{tpu_custom_call.1} parent=5 // pred_region
        // Predicated region
        $region41: #{tpu_custom_call.1} parent=39 // pred_check
          %p286 = pneg %p39
        $region42: #{tpu_custom_call.1} parent=39 // pred_check_branch
          %288 = sbr.rel (%p286) target = $region44
        $region43: #{tpu_custom_call.1} parent=39 // pred_region
          %s289 = smul.u32 4, %s19
          %p290 = scmp.lt.s32.totalorder %s289, 7
          %s291 = scalar_select %p290, %s289, 7
          %s292 = smul.addr %s291, 8
          %s293 = scalar_lea.vmem %s0, %s292
          %s294 = smul.u32 4, %s19
        $region44: #{tpu_custom_call.1} parent=39 // pred_fallthru
          _
        // Predicated region
        $region45: #{tpu_custom_call.1} parent=39 // pred_check
          %p295 = pneg %p65
        $region46: #{tpu_custom_call.1} parent=39 // pred_check_branch
          %297 = sbr.rel (%p295) target = $region48
        $region47: #{tpu_custom_call.1} parent=39 // pred_region
          %s298 = smul.u32 4, %s19
          %p299 = scmp.lt.s32.totalorder %s298, 7
          %s300 = scalar_select %p299, %s298, 7
          %s301 = smul.addr %s300, 8
          %s302 = scalar_lea.vmem %s1, %s301
          %s303 = smul.u32 4, %s19
        $region48: #{tpu_custom_call.1} parent=39 // pred_fallthru
          _
      $region40: #{tpu_custom_call.1} parent=5 // pred_fallthru
        _
      %p304 = scmp.le.s32.totalorder 1, %s19
      %p305 = scmp.lt.s32.totalorder %s19, 3
      %p306 = pnand %p304, %p305
      %p307 = pneg %p306
      // Predicated region
      $region49: #{tpu_custom_call.1} parent=5 // pred_check
        _
      $region50: #{tpu_custom_call.1} parent=5 // pred_check_branch
        %309 = sbr.rel (%p306) target = $region52
      $region51: #{tpu_custom_call.1} parent=5 // pred_region
        %s310 = ssub.s32 %s19, 1
        %s311 = smul.u32 4, %s24
        %p312 = scmp.lt.s32.totalorder %s311, 7
        %s313 = scalar_select %p312, %s311, 7
        %s314 = smul.addr %s313, 8
        %s315 = scalar_lea.vmem %s0, %s314
        %p316 = pneg %p45
        %p317 = pneg %p42
        %s318 = smul.u32 4, %s24
        %p319 = scmp.lt.s32.totalorder %s318, 7
        %s320 = scalar_select %p319, %s318, 7
        %s321 = smul.addr %s320, 8
        %s322 = scalar_lea.vmem %s1, %s321
        %p323 = pneg %p71
        %p324 = pneg %p68
        %p325 = pneg %p92
        %p326 = pneg %p89
        %p327 = pneg %p113
        %p328 = pneg %p110
        %p329 = pneg %p134
        %p330 = pneg %p131
        %p331 = pneg %p155
        %p332 = pneg %p152
        %p333 = pneg %p176
        %p334 = pneg %p173
        %p335 = pneg %p197
        %p336 = pneg %p194
        %p337 = pneg %p223
        %p338 = pneg %p220
        %s339 = smul.u32 4, %s24
        %p340 = scmp.lt.s32.totalorder %s339, 7
        %s341 = scalar_select %p340, %s339, 7
        %s342 = smul.addr %s341, 8
        %s343 = scalar_lea.vmem %s8, %s342
        %p344 = pneg %p249
        %p345 = pneg %p246
        %s346 = sand.u32 %s236, 1
        %s347 = scalar_lea.sflag [#allocation3], %s346
        %s348 = sand.u32 %s236, 1
        %s349 = smul.addr %s348, 32
        %s350 = scalar_lea.vmem [#allocation2], %s349
        %s351 = smul.u32 4, %s24
        %p352 = scmp.lt.s32.totalorder %s351, 7
        %s353 = scalar_select %p352, %s351, 7
        %s354 = smul.addr %s353, 8
        %s355 = scalar_lea.vmem %s0, %s354
        %s356 = smul.u32 4, %s24
        %s357 = smul.u32 4, %s24
        %p358 = scmp.lt.s32.totalorder %s357, 7
        %s359 = scalar_select %p358, %s357, 7
        %s360 = smul.addr %s359, 8
        %s361 = scalar_lea.vmem %s1, %s360
        %s362 = smul.u32 4, %s24
        %s363 = smul.u32 4, %s24
        %p364 = scmp.lt.s32.totalorder %s363, 7
        %s365 = scalar_select %p364, %s363, 7
        %s366 = smul.addr %s365, 8
        %s367 = scalar_lea.vmem %s8, %s366
        %s368 = smul.u32 4, %s24
        %s369 = smul.u32 4, %s24
        %v370 = vld [vmem:[%s355] sm:$0xff]
        %v371 = vld [vmem:[%s355 + $0x8] sm:$0xff]
        %v372 = vld [vmem:[%s355 + $0x10] sm:$0xff]
        %v373 = vld [vmem:[%s355 + $0x18] sm:$0xff]
        %v374 = vld [vmem:[%s361] sm:$0xff]
        %v375 = vld [vmem:[%s361 + $0x8] sm:$0xff]
        %v376 = vld [vmem:[%s361 + $0x10] sm:$0xff]
        %v377 = vld [vmem:[%s361 + $0x18] sm:$0xff]
        %v378 = vld [vmem:[%s2] sm:$0xff]
        %v379 = vld [vmem:[%s2 + $0x8] sm:$0xff]
        %v380 = vld [vmem:[%s2 + $0x10] sm:$0xff]
        %v381 = vld [vmem:[%s2 + $0x18] sm:$0xff]
        %v382 = vld [vmem:[%s4] sm:$0x1]
        %v384 = vperm.slane %v382, 0
        %vm386 = vcmask 261120
        %v388 = vsel %vm386, %v370, 0
        %v391 = vsel %vm386, %v371, 0
        %v394 = vsel %vm386, %v372, 0
        %v397 = vsel %vm386, %v373, 0
        %399 = vmatpush.msra.mxu0 0.0
        %400 = vmatpush.msra.mxu0 0.0
        %401 = vmatpush.msra.mxu0 0.0
        %402 = vmatpush.msra.mxu0 0.0
        %403 = vmatpush.msra.mxu0 0.0
        %404 = vmatpush.msra.mxu0 0.0
        %405 = vmatpush.msra.mxu0 0.0
        %406 = vmatpush.msra.mxu0 0.0
        %407 = vmatpush.msra.mxu0 0.0
        %408 = vmatpush.msra.mxu0 0.0
        %409 = vmatpush.msra.mxu0 0.0
        %410 = vmatpush.msra.mxu0 0.0
        %411 = vmatpush.msra.mxu0 %v381
        %412 = vmatpush.msra.mxu0 %v380
        %413 = vmatpush.msra.mxu0 %v379
        %414 = vmatpush.msra.mxu0 %v378
        %415 = vmatmul.f32.gmra.mxu0 %v388
        %v416 = vpop.f32.mrf.mxu0
        %v417 = vadd.f32 %v384, %v416
        %418 = vmatmul.f32.gmra.mxu0 %v391
        %v419 = vpop.f32.mrf.mxu0
        %v420 = vadd.f32 %v384, %v419
        %421 = vmatmul.f32.gmra.mxu0 %v394
        %v422 = vpop.f32.mrf.mxu0
        %v423 = vadd.f32 %v384, %v422
        %424 = vmatmul.f32.gmra.mxu0 %v397
        %v425 = vpop.f32.mrf.mxu0
        %v426 = vadd.f32 %v384, %v425
        %427 = vdwg.mxu0
        %v428 = vld [vmem:[%s3] sm:$0xff]
        %v429 = vld [vmem:[%s3 + $0x8] sm:$0xff]
        %v430 = vld [vmem:[%s3 + $0x10] sm:$0xff]
        %v431 = vld [vmem:[%s3 + $0x18] sm:$0xff]
        %v432 = vld [vmem:[%s5] sm:$0x1]
        %v434 = vperm.slane %v432, 0
        %v437 = vsel %vm386, %v374, 0
        %v440 = vsel %vm386, %v375, 0
        %v443 = vsel %vm386, %v376, 0
        %v446 = vsel %vm386, %v377, 0
        %448 = vmatpush.msra.mxu0 0.0
        %449 = vmatpush.msra.mxu0 0.0
        %450 = vmatpush.msra.mxu0 0.0
        %451 = vmatpush.msra.mxu0 0.0
        %452 = vmatpush.msra.mxu0 0.0
        %453 = vmatpush.msra.mxu0 0.0
        %454 = vmatpush.msra.mxu0 0.0
        %455 = vmatpush.msra.mxu0 0.0
        %456 = vmatpush.msra.mxu0 0.0
        %457 = vmatpush.msra.mxu0 0.0
        %458 = vmatpush.msra.mxu0 0.0
        %459 = vmatpush.msra.mxu0 0.0
        %460 = vmatpush.msra.mxu0 %v431
        %461 = vmatpush.msra.mxu0 %v430
        %462 = vmatpush.msra.mxu0 %v429
        %463 = vmatpush.msra.mxu0 %v428
        %464 = vmatmul.f32.gmra.mxu0 %v437
        %v465 = vpop.f32.mrf.mxu0
        %v466 = vadd.f32 %v434, %v465
        %467 = vmatmul.f32.gmra.mxu0 %v440
        %v468 = vpop.f32.mrf.mxu0
        %v469 = vadd.f32 %v434, %v468
        %470 = vmatmul.f32.gmra.mxu0 %v443
        %v471 = vpop.f32.mrf.mxu0
        %v472 = vadd.f32 %v434, %v471
        %473 = vmatmul.f32.gmra.mxu0 %v446
        %v474 = vpop.f32.mrf.mxu0
        %v475 = vadd.f32 %v434, %v474
        %476 = vdwg.mxu0
        %v477 = vmul.f32 %v417, 0.35355338
        %v478 = vmul.f32 %v420, 0.35355338
        %v479 = vmul.f32 %v423, 0.35355338
        %v480 = vmul.f32 %v426, 0.35355338
        %v481 = vld [vmem:[%s6] sm:$0xff]
        %v482 = vld [vmem:[%s6 + $0x8] sm:$0xff]
        %v483 = vld [vmem:[%s6 + $0x10] sm:$0xff]
        %v484 = vld [vmem:[%s6 + $0x18] sm:$0xff]
        %vm485 = vcmask 64512
        %v487 = vsel %vm485, %v477, 0
        %v490 = vsel %vm485, %v466, 0
        %492 = vmatpush.xpose.msra.mxu0 0.0
        %493 = vmatpush.xpose.msra.mxu0 0.0
        %494 = vmatpush.xpose.msra.mxu0 0.0
        %495 = vmatpush.xpose.msra.mxu0 0.0
        %496 = vmatpush.xpose.msra.mxu0 0.0
        %497 = vmatpush.xpose.msra.mxu0 0.0
        %498 = vmatpush.xpose.msra.mxu0 0.0
        %499 = vmatpush.xpose.msra.mxu0 0.0
        %500 = vmatpush.xpose.msra.mxu0 0.0
        %501 = vmatpush.xpose.msra.mxu0 0.0
        %502 = vmatpush.xpose.msra.mxu0 0.0
        %503 = vmatpush.xpose.msra.mxu0 0.0
        %504 = vmatpush.xpose.msra.mxu0 0.0
        %505 = vmatpush.xpose.msra.mxu0 0.0
        %506 = vmatpush.xpose.msra.mxu0 0.0
        %507 = vmatpush.xpose.msra.mxu0 %v490
        %508 = vmatmul.f32.gmra.mxu0 %v487
        %v509 = vpop.f32.mrf.mxu0
        %v510 = vadd.f32 0.0, %v509
        %511 = vdwg.mxu0
        %v513 = vsel %vm485, %v478, 0
        %v516 = vsel %vm485, %v469, 0
        %518 = vmatpush.xpose.msra.mxu0 0.0
        %519 = vmatpush.xpose.msra.mxu0 0.0
        %520 = vmatpush.xpose.msra.mxu0 0.0
        %521 = vmatpush.xpose.msra.mxu0 0.0
        %522 = vmatpush.xpose.msra.mxu0 0.0
        %523 = vmatpush.xpose.msra.mxu0 0.0
        %524 = vmatpush.xpose.msra.mxu0 0.0
        %525 = vmatpush.xpose.msra.mxu0 0.0
        %526 = vmatpush.xpose.msra.mxu0 0.0
        %527 = vmatpush.xpose.msra.mxu0 0.0
        %528 = vmatpush.xpose.msra.mxu0 0.0
        %529 = vmatpush.xpose.msra.mxu0 0.0
        %530 = vmatpush.xpose.msra.mxu0 0.0
        %531 = vmatpush.xpose.msra.mxu0 0.0
        %532 = vmatpush.xpose.msra.mxu0 0.0
        %533 = vmatpush.xpose.msra.mxu0 %v516
        %534 = vmatmul.f32.gmra.mxu0 %v513
        %v535 = vpop.f32.mrf.mxu0
        %v536 = vadd.f32 0.0, %v535
        %537 = vdwg.mxu0
        %v539 = vsel %vm485, %v479, 0
        %v542 = vsel %vm485, %v472, 0
        %544 = vmatpush.xpose.msra.mxu0 0.0
        %545 = vmatpush.xpose.msra.mxu0 0.0
        %546 = vmatpush.xpose.msra.mxu0 0.0
        %547 = vmatpush.xpose.msra.mxu0 0.0
        %548 = vmatpush.xpose.msra.mxu0 0.0
        %549 = vmatpush.xpose.msra.mxu0 0.0
        %550 = vmatpush.xpose.msra.mxu0 0.0
        %551 = vmatpush.xpose.msra.mxu0 0.0
        %552 = vmatpush.xpose.msra.mxu0 0.0
        %553 = vmatpush.xpose.msra.mxu0 0.0
        %554 = vmatpush.xpose.msra.mxu0 0.0
        %555 = vmatpush.xpose.msra.mxu0 0.0
        %556 = vmatpush.xpose.msra.mxu0 0.0
        %557 = vmatpush.xpose.msra.mxu0 0.0
        %558 = vmatpush.xpose.msra.mxu0 0.0
        %559 = vmatpush.xpose.msra.mxu0 %v542
        %560 = vmatmul.f32.gmra.mxu0 %v539
        %v561 = vpop.f32.mrf.mxu0
        %v562 = vadd.f32 0.0, %v561
        %563 = vdwg.mxu0
        %v565 = vsel %vm485, %v480, 0
        %v568 = vsel %vm485, %v475, 0
        %570 = vmatpush.xpose.msra.mxu0 0.0
        %571 = vmatpush.xpose.msra.mxu0 0.0
        %572 = vmatpush.xpose.msra.mxu0 0.0
        %573 = vmatpush.xpose.msra.mxu0 0.0
        %574 = vmatpush.xpose.msra.mxu0 0.0
        %575 = vmatpush.xpose.msra.mxu0 0.0
        %576 = vmatpush.xpose.msra.mxu0 0.0
        %577 = vmatpush.xpose.msra.mxu0 0.0
        %578 = vmatpush.xpose.msra.mxu0 0.0
        %579 = vmatpush.xpose.msra.mxu0 0.0
        %580 = vmatpush.xpose.msra.mxu0 0.0
        %581 = vmatpush.xpose.msra.mxu0 0.0
        %582 = vmatpush.xpose.msra.mxu0 0.0
        %583 = vmatpush.xpose.msra.mxu0 0.0
        %584 = vmatpush.xpose.msra.mxu0 0.0
        %585 = vmatpush.xpose.msra.mxu0 %v568
        %586 = vmatmul.f32.gmra.mxu0 %v565
        %v587 = vpop.f32.mrf.mxu0
        %v588 = vadd.f32 0.0, %v587
        %589 = vdwg.mxu0
        %v590 = vsel %vm485, %v510, -inf
        %591 = vmax.xlane.f32.xlu0 %v590
        %v592 = vpop.xlane.xlu0 %591
        %v593 = vsel %vm485, %v536, -inf
        %594 = vmax.xlane.f32.xlu0 %v593
        %v595 = vpop.xlane.xlu0 %594
        %v596 = vsel %vm485, %v562, -inf
        %597 = vmax.xlane.f32.xlu0 %v596
        %v598 = vpop.xlane.xlu0 %597
        %v599 = vsel %vm485, %v588, -inf
        %600 = vmax.xlane.f32.xlu0 %v599
        %v601 = vpop.xlane.xlu0 %600
        %v602 = vsub.f32 %v510, %v592
        %v603 = vsub.f32 %v536, %v595
        %v604 = vsub.f32 %v562, %v598
        %v605 = vsub.f32 %v588, %v601
        %v606 = vmul.f32 %v602, 1.442695
        %v607 = vpow.pop %v606
        %v608 = vmul.f32 %v603, 1.442695
        %v609 = vpow.pop %v608
        %v610 = vmul.f32 %v604, 1.442695
        %v611 = vpow.pop %v610
        %v612 = vmul.f32 %v605, 1.442695
        %v613 = vpow.pop %v612
        %v614 = vsel %vm485, %v607, 0.0
        %615 = vadd.xlane.f32.xlu0 %v614
        %v616 = vpop.xlane.xlu0 %615
        %v617 = vsel %vm485, %v609, 0.0
        %618 = vadd.xlane.f32.xlu0 %v617
        %v619 = vpop.xlane.xlu0 %618
        %v620 = vsel %vm485, %v611, 0.0
        %621 = vadd.xlane.f32.xlu0 %v620
        %v622 = vpop.xlane.xlu0 %621
        %v623 = vsel %vm485, %v613, 0.0
        %624 = vadd.xlane.f32.xlu0 %v623
        %v625 = vpop.xlane.xlu0 %624
        %v626 = vrcp.pop %v616
        %v627 = vrcp.pop %v619
        %v628 = vrcp.pop %v622
        %v629 = vrcp.pop %v625
        %v630 = vmul.f32 %v607, %v626
        %v631 = vmul.f32 %v609, %v627
        %v632 = vmul.f32 %v611, %v628
        %v633 = vmul.f32 %v613, %v629
        %v634 = vadd.f32 %v630, 0.0
        %v635 = vadd.f32 %v631, 0.0
        %v636 = vadd.f32 %v632, 0.0
        %v637 = vadd.f32 %v633, 0.0
        %638 = vrot.lane.b32.xlu0 %v466, 96
        %v639 = vpop.permute.xlu0 %638
        %640 = vrot.lane.b32.xlu0 %v469, 96
        %v641 = vpop.permute.xlu0 %640
        %642 = vrot.lane.b32.xlu0 %v472, 96
        %v643 = vpop.permute.xlu0 %642
        %644 = vrot.lane.b32.xlu0 %v475, 96
        %v645 = vpop.permute.xlu0 %644
        %v646 = vsel %vm485, %v639, 0
        %v648 = vsel %vm485, %v641, 0
        %v650 = vsel %vm485, %v643, 0
        %v652 = vsel %vm485, %v645, 0
        %654 = vmatpush.msra.mxu0 0.0
        %655 = vmatpush.msra.mxu0 0.0
        %656 = vmatpush.msra.mxu0 0.0
        %657 = vmatpush.msra.mxu0 0.0
        %658 = vmatpush.msra.mxu0 0.0
        %659 = vmatpush.msra.mxu0 0.0
        %660 = vmatpush.msra.mxu0 0.0
        %661 = vmatpush.msra.mxu0 0.0
        %662 = vmatpush.msra.mxu0 0.0
        %663 = vmatpush.msra.mxu0 0.0
        %664 = vmatpush.msra.mxu0 0.0
        %665 = vmatpush.msra.mxu0 0.0
        %666 = vmatpush.msra.mxu0 0.0
        %667 = vmatpush.msra.mxu0 0.0
        %668 = vmatpush.msra.mxu0 0.0
        %669 = vmatpush.msra.mxu0 %v481
        %670 = vmatmul.f32.gmra.mxu0 %v646
        %v671 = vpop.f32.mrf.mxu0
        %v672 = vadd.f32 0.0, %v671
        %673 = vmatmul.f32.gmra.mxu0 %v648
        %v674 = vpop.f32.mrf.mxu0
        %v675 = vadd.f32 0.0, %v674
        %676 = vmatmul.f32.gmra.mxu0 %v650
        %v677 = vpop.f32.mrf.mxu0
        %v678 = vadd.f32 0.0, %v677
        %679 = vmatmul.f32.gmra.mxu0 %v652
        %v680 = vpop.f32.mrf.mxu0
        %v681 = vadd.f32 0.0, %v680
        %682 = vdwg.mxu0
        %683 = vrot.lane.b32.xlu0 %v477, 120
        %v684 = vpop.permute.xlu0 %683
        %685 = vrot.lane.b32.xlu0 %v466, 120
        %v686 = vpop.permute.xlu0 %685
        %v687 = vsel %vm485, %v684, 0
        %v689 = vsel %vm485, %v686, 0
        %691 = vmatpush.xpose.msra.mxu0 0.0
        %692 = vmatpush.xpose.msra.mxu0 0.0
        %693 = vmatpush.xpose.msra.mxu0 0.0
        %694 = vmatpush.xpose.msra.mxu0 0.0
        %695 = vmatpush.xpose.msra.mxu0 0.0
        %696 = vmatpush.xpose.msra.mxu0 0.0
        %697 = vmatpush.xpose.msra.mxu0 0.0
        %698 = vmatpush.xpose.msra.mxu0 0.0
        %699 = vmatpush.xpose.msra.mxu0 0.0
        %700 = vmatpush.xpose.msra.mxu0 0.0
        %701 = vmatpush.xpose.msra.mxu0 0.0
        %702 = vmatpush.xpose.msra.mxu0 0.0
        %703 = vmatpush.xpose.msra.mxu0 0.0
        %704 = vmatpush.xpose.msra.mxu0 0.0
        %705 = vmatpush.xpose.msra.mxu0 0.0
        %706 = vmatpush.xpose.msra.mxu0 %v689
        %707 = vmatmul.f32.gmra.mxu0 %v687
        %v708 = vpop.f32.mrf.mxu0
        %v709 = vadd.f32 0.0, %v708
        %710 = vdwg.mxu0
        %711 = vrot.lane.b32.xlu0 %v478, 120
        %v712 = vpop.permute.xlu0 %711
        %713 = vrot.lane.b32.xlu0 %v469, 120
        %v714 = vpop.permute.xlu0 %713
        %v715 = vsel %vm485, %v712, 0
        %v717 = vsel %vm485, %v714, 0
        %719 = vmatpush.xpose.msra.mxu0 0.0
        %720 = vmatpush.xpose.msra.mxu0 0.0
        %721 = vmatpush.xpose.msra.mxu0 0.0
        %722 = vmatpush.xpose.msra.mxu0 0.0
        %723 = vmatpush.xpose.msra.mxu0 0.0
        %724 = vmatpush.xpose.msra.mxu0 0.0
        %725 = vmatpush.xpose.msra.mxu0 0.0
        %726 = vmatpush.xpose.msra.mxu0 0.0
        %727 = vmatpush.xpose.msra.mxu0 0.0
        %728 = vmatpush.xpose.msra.mxu0 0.0
        %729 = vmatpush.xpose.msra.mxu0 0.0
        %730 = vmatpush.xpose.msra.mxu0 0.0
        %731 = vmatpush.xpose.msra.mxu0 0.0
        %732 = vmatpush.xpose.msra.mxu0 0.0
        %733 = vmatpush.xpose.msra.mxu0 0.0
        %734 = vmatpush.xpose.msra.mxu0 %v717
        %735 = vmatmul.f32.gmra.mxu0 %v715
        %v736 = vpop.f32.mrf.mxu0
        %v737 = vadd.f32 0.0, %v736
        %738 = vdwg.mxu0
        %739 = vrot.lane.b32.xlu0 %v479, 120
        %v740 = vpop.permute.xlu0 %739
        %741 = vrot.lane.b32.xlu0 %v472, 120
        %v742 = vpop.permute.xlu0 %741
        %v743 = vsel %vm485, %v740, 0
        %v745 = vsel %vm485, %v742, 0
        %747 = vmatpush.xpose.msra.mxu0 0.0
        %748 = vmatpush.xpose.msra.mxu0 0.0
        %749 = vmatpush.xpose.msra.mxu0 0.0
        %750 = vmatpush.xpose.msra.mxu0 0.0
        %751 = vmatpush.xpose.msra.mxu0 0.0
        %752 = vmatpush.xpose.msra.mxu0 0.0
        %753 = vmatpush.xpose.msra.mxu0 0.0
        %754 = vmatpush.xpose.msra.mxu0 0.0
        %755 = vmatpush.xpose.msra.mxu0 0.0
        %756 = vmatpush.xpose.msra.mxu0 0.0
        %757 = vmatpush.xpose.msra.mxu0 0.0
        %758 = vmatpush.xpose.msra.mxu0 0.0
        %759 = vmatpush.xpose.msra.mxu0 0.0
        %760 = vmatpush.xpose.msra.mxu0 0.0
        %761 = vmatpush.xpose.msra.mxu0 0.0
        %762 = vmatpush.xpose.msra.mxu0 %v745
        %763 = vmatmul.f32.gmra.mxu0 %v743
        %v764 = vpop.f32.mrf.mxu0
        %v765 = vadd.f32 0.0, %v764
        %766 = vdwg.mxu0
        %767 = vrot.lane.b32.xlu0 %v480, 120
        %v768 = vpop.permute.xlu0 %767
        %769 = vrot.lane.b32.xlu0 %v475, 120
        %v770 = vpop.permute.xlu0 %769
        %v771 = vsel %vm485, %v768, 0
        %v773 = vsel %vm485, %v770, 0
        %775 = vmatpush.xpose.msra.mxu0 0.0
        %776 = vmatpush.xpose.msra.mxu0 0.0
        %777 = vmatpush.xpose.msra.mxu0 0.0
        %778 = vmatpush.xpose.msra.mxu0 0.0
        %779 = vmatpush.xpose.msra.mxu0 0.0
        %780 = vmatpush.xpose.msra.mxu0 0.0
        %781 = vmatpush.xpose.msra.mxu0 0.0
        %782 = vmatpush.xpose.msra.mxu0 0.0
        %783 = vmatpush.xpose.msra.mxu0 0.0
        %784 = vmatpush.xpose.msra.mxu0 0.0
        %785 = vmatpush.xpose.msra.mxu0 0.0
        %786 = vmatpush.xpose.msra.mxu0 0.0
        %787 = vmatpush.xpose.msra.mxu0 0.0
        %788 = vmatpush.xpose.msra.mxu0 0.0
        %789 = vmatpush.xpose.msra.mxu0 0.0
        %790 = vmatpush.xpose.msra.mxu0 %v773
        %791 = vmatmul.f32.gmra.mxu0 %v771
        %v792 = vpop.f32.mrf.mxu0
        %v793 = vadd.f32 0.0, %v792
        %794 = vdwg.mxu0
        %v795 = vsel %vm485, %v709, -inf
        %796 = vmax.xlane.f32.xlu0 %v795
        %v797 = vpop.xlane.xlu0 %796
        %v798 = vsel %vm485, %v737, -inf
        %799 = vmax.xlane.f32.xlu0 %v798
        %v800 = vpop.xlane.xlu0 %799
        %v801 = vsel %vm485, %v765, -inf
        %802 = vmax.xlane.f32.xlu0 %v801
        %v803 = vpop.xlane.xlu0 %802
        %v804 = vsel %vm485, %v793, -inf
        %805 = vmax.xlane.f32.xlu0 %v804
        %v806 = vpop.xlane.xlu0 %805
        %v807 = vsub.f32 %v709, %v797
        %v808 = vsub.f32 %v737, %v800
        %v809 = vsub.f32 %v765, %v803
        %v810 = vsub.f32 %v793, %v806
        %v811 = vmul.f32 %v807, 1.442695
        %v812 = vpow.pop %v811
        %v813 = vmul.f32 %v808, 1.442695
        %v814 = vpow.pop %v813
        %v815 = vmul.f32 %v809, 1.442695
        %v816 = vpow.pop %v815
        %v817 = vmul.f32 %v810, 1.442695
        %v818 = vpow.pop %v817
        %v819 = vsel %vm485, %v812, 0.0
        %820 = vadd.xlane.f32.xlu0 %v819
        %v821 = vpop.xlane.xlu0 %820
        %v822 = vsel %vm485, %v814, 0.0
        %823 = vadd.xlane.f32.xlu0 %v822
        %v824 = vpop.xlane.xlu0 %823
        %v825 = vsel %vm485, %v816, 0.0
        %826 = vadd.xlane.f32.xlu0 %v825
        %v827 = vpop.xlane.xlu0 %826
        %v828 = vsel %vm485, %v818, 0.0
        %829 = vadd.xlane.f32.xlu0 %v828
        %v830 = vpop.xlane.xlu0 %829
        %v831 = vrcp.pop %v821
        %v832 = vrcp.pop %v824
        %v833 = vrcp.pop %v827
        %v834 = vrcp.pop %v830
        %v835 = vmul.f32 %v812, %v831
        %v836 = vmul.f32 %v814, %v832
        %v837 = vmul.f32 %v816, %v833
        %v838 = vmul.f32 %v818, %v834
        %v839 = vadd.f32 %v634, %v835
        %v840 = vadd.f32 %v635, %v836
        %v841 = vadd.f32 %v636, %v837
        %v842 = vadd.f32 %v637, %v838
        %843 = vrot.lane.b32.xlu0 %v466, 88
        %v844 = vpop.permute.xlu0 %843
        %845 = vrot.lane.b32.xlu0 %v469, 88
        %v846 = vpop.permute.xlu0 %845
        %847 = vrot.lane.b32.xlu0 %v472, 88
        %v848 = vpop.permute.xlu0 %847
        %849 = vrot.lane.b32.xlu0 %v475, 88
        %v850 = vpop.permute.xlu0 %849
        %v851 = vsel %vm485, %v844, 0
        %v853 = vsel %vm485, %v846, 0
        %v855 = vsel %vm485, %v848, 0
        %v857 = vsel %vm485, %v850, 0
        %859 = vmatpush.msra.mxu0 0.0
        %860 = vmatpush.msra.mxu0 0.0
        %861 = vmatpush.msra.mxu0 0.0
        %862 = vmatpush.msra.mxu0 0.0
        %863 = vmatpush.msra.mxu0 0.0
        %864 = vmatpush.msra.mxu0 0.0
        %865 = vmatpush.msra.mxu0 0.0
        %866 = vmatpush.msra.mxu0 0.0
        %867 = vmatpush.msra.mxu0 0.0
        %868 = vmatpush.msra.mxu0 0.0
        %869 = vmatpush.msra.mxu0 0.0
        %870 = vmatpush.msra.mxu0 0.0
        %871 = vmatpush.msra.mxu0 0.0
        %872 = vmatpush.msra.mxu0 0.0
        %873 = vmatpush.msra.mxu0 0.0
        %874 = vmatpush.msra.mxu0 %v482
        %875 = vmatmul.f32.gmra.mxu0 %v851
        %v876 = vpop.f32.mrf.mxu0
        %v877 = vadd.f32 0.0, %v876
        %878 = vmatmul.f32.gmra.mxu0 %v853
        %v879 = vpop.f32.mrf.mxu0
        %v880 = vadd.f32 0.0, %v879
        %881 = vmatmul.f32.gmra.mxu0 %v855
        %v882 = vpop.f32.mrf.mxu0
        %v883 = vadd.f32 0.0, %v882
        %884 = vmatmul.f32.gmra.mxu0 %v857
        %v885 = vpop.f32.mrf.mxu0
        %v886 = vadd.f32 0.0, %v885
        %887 = vdwg.mxu0
        %v889 = vsel %vm485, %v835, 0
        %891 = vmatpush.msra.mxu0 0.0
        %892 = vmatpush.msra.mxu0 0.0
        %893 = vmatpush.msra.mxu0 0.0
        %894 = vmatpush.msra.mxu0 0.0
        %895 = vmatpush.msra.mxu0 0.0
        %896 = vmatpush.msra.mxu0 0.0
        %897 = vmatpush.msra.mxu0 0.0
        %898 = vmatpush.msra.mxu0 0.0
        %899 = vmatpush.msra.mxu0 0.0
        %900 = vmatpush.msra.mxu0 0.0
        %901 = vmatpush.msra.mxu0 0.0
        %902 = vmatpush.msra.mxu0 0.0
        %903 = vmatpush.msra.mxu0 0.0
        %904 = vmatpush.msra.mxu0 0.0
        %905 = vmatpush.msra.mxu0 0.0
        %906 = vmatpush.msra.mxu0 %v877
        %907 = vmatmul.f32.gmra.mxu0 %v889
        %v908 = vpop.f32.mrf.mxu0
        %v909 = vadd.f32 0.0, %v908
        %910 = vdwg.mxu0
        %v912 = vsel %vm485, %v836, 0
        %914 = vmatpush.msra.mxu0 0.0
        %915 = vmatpush.msra.mxu0 0.0
        %916 = vmatpush.msra.mxu0 0.0
        %917 = vmatpush.msra.mxu0 0.0
        %918 = vmatpush.msra.mxu0 0.0
        %919 = vmatpush.msra.mxu0 0.0
        %920 = vmatpush.msra.mxu0 0.0
        %921 = vmatpush.msra.mxu0 0.0
        %922 = vmatpush.msra.mxu0 0.0
        %923 = vmatpush.msra.mxu0 0.0
        %924 = vmatpush.msra.mxu0 0.0
        %925 = vmatpush.msra.mxu0 0.0
        %926 = vmatpush.msra.mxu0 0.0
        %927 = vmatpush.msra.mxu0 0.0
        %928 = vmatpush.msra.mxu0 0.0
        %929 = vmatpush.msra.mxu0 %v880
        %930 = vmatmul.f32.gmra.mxu0 %v912
        %v931 = vpop.f32.mrf.mxu0
        %v932 = vadd.f32 0.0, %v931
        %933 = vdwg.mxu0
        %v935 = vsel %vm485, %v837, 0
        %937 = vmatpush.msra.mxu0 0.0
        %938 = vmatpush.msra.mxu0 0.0
        %939 = vmatpush.msra.mxu0 0.0
        %940 = vmatpush.msra.mxu0 0.0
        %941 = vmatpush.msra.mxu0 0.0
        %942 = vmatpush.msra.mxu0 0.0
        %943 = vmatpush.msra.mxu0 0.0
        %944 = vmatpush.msra.mxu0 0.0
        %945 = vmatpush.msra.mxu0 0.0
        %946 = vmatpush.msra.mxu0 0.0
        %947 = vmatpush.msra.mxu0 0.0
        %948 = vmatpush.msra.mxu0 0.0
        %949 = vmatpush.msra.mxu0 0.0
        %950 = vmatpush.msra.mxu0 0.0
        %951 = vmatpush.msra.mxu0 0.0
        %952 = vmatpush.msra.mxu0 %v883
        %953 = vmatmul.f32.gmra.mxu0 %v935
        %v954 = vpop.f32.mrf.mxu0
        %v955 = vadd.f32 0.0, %v954
        %956 = vdwg.mxu0
        %v958 = vsel %vm485, %v838, 0
        %960 = vmatpush.msra.mxu0 0.0
        %961 = vmatpush.msra.mxu0 0.0
        %962 = vmatpush.msra.mxu0 0.0
        %963 = vmatpush.msra.mxu0 0.0
        %964 = vmatpush.msra.mxu0 0.0
        %965 = vmatpush.msra.mxu0 0.0
        %966 = vmatpush.msra.mxu0 0.0
        %967 = vmatpush.msra.mxu0 0.0
        %968 = vmatpush.msra.mxu0 0.0
        %969 = vmatpush.msra.mxu0 0.0
        %970 = vmatpush.msra.mxu0 0.0
        %971 = vmatpush.msra.mxu0 0.0
        %972 = vmatpush.msra.mxu0 0.0
        %973 = vmatpush.msra.mxu0 0.0
        %974 = vmatpush.msra.mxu0 0.0
        %975 = vmatpush.msra.mxu0 %v886
        %976 = vmatmul.f32.gmra.mxu0 %v958
        %v977 = vpop.f32.mrf.mxu0
        %v978 = vadd.f32 0.0, %v977
        %979 = vdwg.mxu0
        %v981 = vsel %vm485, %v630, 0
        %983 = vmatpush.msra.mxu0 0.0
        %984 = vmatpush.msra.mxu0 0.0
        %985 = vmatpush.msra.mxu0 0.0
        %986 = vmatpush.msra.mxu0 0.0
        %987 = vmatpush.msra.mxu0 0.0
        %988 = vmatpush.msra.mxu0 0.0
        %989 = vmatpush.msra.mxu0 0.0
        %990 = vmatpush.msra.mxu0 0.0
        %991 = vmatpush.msra.mxu0 0.0
        %992 = vmatpush.msra.mxu0 0.0
        %993 = vmatpush.msra.mxu0 0.0
        %994 = vmatpush.msra.mxu0 0.0
        %995 = vmatpush.msra.mxu0 0.0
        %996 = vmatpush.msra.mxu0 0.0
        %997 = vmatpush.msra.mxu0 0.0
        %998 = vmatpush.msra.mxu0 %v672
        %999 = vmatmul.f32.gmra.mxu0 %v981
        %v1000 = vpop.f32.mrf.mxu0
        %v1001 = vadd.f32 %v909, %v1000
        %1002 = vdwg.mxu0
        %v1004 = vsel %vm485, %v631, 0
        %1006 = vmatpush.msra.mxu0 0.0
        %1007 = vmatpush.msra.mxu0 0.0
        %1008 = vmatpush.msra.mxu0 0.0
        %1009 = vmatpush.msra.mxu0 0.0
        %1010 = vmatpush.msra.mxu0 0.0
        %1011 = vmatpush.msra.mxu0 0.0
        %1012 = vmatpush.msra.mxu0 0.0
        %1013 = vmatpush.msra.mxu0 0.0
        %1014 = vmatpush.msra.mxu0 0.0
        %1015 = vmatpush.msra.mxu0 0.0
        %1016 = vmatpush.msra.mxu0 0.0
        %1017 = vmatpush.msra.mxu0 0.0
        %1018 = vmatpush.msra.mxu0 0.0
        %1019 = vmatpush.msra.mxu0 0.0
        %1020 = vmatpush.msra.mxu0 0.0
        %1021 = vmatpush.msra.mxu0 %v675
        %1022 = vmatmul.f32.gmra.mxu0 %v1004
        %v1023 = vpop.f32.mrf.mxu0
        %v1024 = vadd.f32 %v932, %v1023
        %1025 = vdwg.mxu0
        %v1027 = vsel %vm485, %v632, 0
        %1029 = vmatpush.msra.mxu0 0.0
        %1030 = vmatpush.msra.mxu0 0.0
        %1031 = vmatpush.msra.mxu0 0.0
        %1032 = vmatpush.msra.mxu0 0.0
        %1033 = vmatpush.msra.mxu0 0.0
        %1034 = vmatpush.msra.mxu0 0.0
        %1035 = vmatpush.msra.mxu0 0.0
        %1036 = vmatpush.msra.mxu0 0.0
        %1037 = vmatpush.msra.mxu0 0.0
        %1038 = vmatpush.msra.mxu0 0.0
        %1039 = vmatpush.msra.mxu0 0.0
        %1040 = vmatpush.msra.mxu0 0.0
        %1041 = vmatpush.msra.mxu0 0.0
        %1042 = vmatpush.msra.mxu0 0.0
        %1043 = vmatpush.msra.mxu0 0.0
        %1044 = vmatpush.msra.mxu0 %v678
        %1045 = vmatmul.f32.gmra.mxu0 %v1027
        %v1046 = vpop.f32.mrf.mxu0
        %v1047 = vadd.f32 %v955, %v1046
        %1048 = vdwg.mxu0
        %v1050 = vsel %vm485, %v633, 0
        %1052 = vmatpush.msra.mxu0 0.0
        %1053 = vmatpush.msra.mxu0 0.0
        %1054 = vmatpush.msra.mxu0 0.0
        %1055 = vmatpush.msra.mxu0 0.0
        %1056 = vmatpush.msra.mxu0 0.0
        %1057 = vmatpush.msra.mxu0 0.0
        %1058 = vmatpush.msra.mxu0 0.0
        %1059 = vmatpush.msra.mxu0 0.0
        %1060 = vmatpush.msra.mxu0 0.0
        %1061 = vmatpush.msra.mxu0 0.0
        %1062 = vmatpush.msra.mxu0 0.0
        %1063 = vmatpush.msra.mxu0 0.0
        %1064 = vmatpush.msra.mxu0 0.0
        %1065 = vmatpush.msra.mxu0 0.0
        %1066 = vmatpush.msra.mxu0 0.0
        %1067 = vmatpush.msra.mxu0 %v681
        %1068 = vmatmul.f32.gmra.mxu0 %v1050
        %v1069 = vpop.f32.mrf.mxu0
        %v1070 = vadd.f32 %v978, %v1069
        %1071 = vdwg.mxu0
        %1072 = vrot.lane.b32.xlu0 %v477, 112
        %v1073 = vpop.permute.xlu0 %1072
        %1074 = vrot.lane.b32.xlu0 %v466, 112
        %v1075 = vpop.permute.xlu0 %1074
        %v1076 = vsel %vm485, %v1073, 0
        %v1078 = vsel %vm485, %v1075, 0
        %1080 = vmatpush.xpose.msra.mxu0 0.0
        %1081 = vmatpush.xpose.msra.mxu0 0.0
        %1082 = vmatpush.xpose.msra.mxu0 0.0
        %1083 = vmatpush.xpose.msra.mxu0 0.0
        %1084 = vmatpush.xpose.msra.mxu0 0.0
        %1085 = vmatpush.xpose.msra.mxu0 0.0
        %1086 = vmatpush.xpose.msra.mxu0 0.0
        %1087 = vmatpush.xpose.msra.mxu0 0.0
        %1088 = vmatpush.xpose.msra.mxu0 0.0
        %1089 = vmatpush.xpose.msra.mxu0 0.0
        %1090 = vmatpush.xpose.msra.mxu0 0.0
        %1091 = vmatpush.xpose.msra.mxu0 0.0
        %1092 = vmatpush.xpose.msra.mxu0 0.0
        %1093 = vmatpush.xpose.msra.mxu0 0.0
        %1094 = vmatpush.xpose.msra.mxu0 0.0
        %1095 = vmatpush.xpose.msra.mxu0 %v1078
        %1096 = vmatmul.f32.gmra.mxu0 %v1076
        %v1097 = vpop.f32.mrf.mxu0
        %v1098 = vadd.f32 0.0, %v1097
        %1099 = vdwg.mxu0
        %1100 = vrot.lane.b32.xlu0 %v478, 112
        %v1101 = vpop.permute.xlu0 %1100
        %1102 = vrot.lane.b32.xlu0 %v469, 112
        %v1103 = vpop.permute.xlu0 %1102
        %v1104 = vsel %vm485, %v1101, 0
        %v1106 = vsel %vm485, %v1103, 0
        %1108 = vmatpush.xpose.msra.mxu0 0.0
        %1109 = vmatpush.xpose.msra.mxu0 0.0
        %1110 = vmatpush.xpose.msra.mxu0 0.0
        %1111 = vmatpush.xpose.msra.mxu0 0.0
        %1112 = vmatpush.xpose.msra.mxu0 0.0
        %1113 = vmatpush.xpose.msra.mxu0 0.0
        %1114 = vmatpush.xpose.msra.mxu0 0.0
        %1115 = vmatpush.xpose.msra.mxu0 0.0
        %1116 = vmatpush.xpose.msra.mxu0 0.0
        %1117 = vmatpush.xpose.msra.mxu0 0.0
        %1118 = vmatpush.xpose.msra.mxu0 0.0
        %1119 = vmatpush.xpose.msra.mxu0 0.0
        %1120 = vmatpush.xpose.msra.mxu0 0.0
        %1121 = vmatpush.xpose.msra.mxu0 0.0
        %1122 = vmatpush.xpose.msra.mxu0 0.0
        %1123 = vmatpush.xpose.msra.mxu0 %v1106
        %1124 = vmatmul.f32.gmra.mxu0 %v1104
        %v1125 = vpop.f32.mrf.mxu0
        %v1126 = vadd.f32 0.0, %v1125
        %1127 = vdwg.mxu0
        %1128 = vrot.lane.b32.xlu0 %v479, 112
        %v1129 = vpop.permute.xlu0 %1128
        %1130 = vrot.lane.b32.xlu0 %v472, 112
        %v1131 = vpop.permute.xlu0 %1130
        %v1132 = vsel %vm485, %v1129, 0
        %v1134 = vsel %vm485, %v1131, 0
        %1136 = vmatpush.xpose.msra.mxu0 0.0
        %1137 = vmatpush.xpose.msra.mxu0 0.0
        %1138 = vmatpush.xpose.msra.mxu0 0.0
        %1139 = vmatpush.xpose.msra.mxu0 0.0
        %1140 = vmatpush.xpose.msra.mxu0 0.0
        %1141 = vmatpush.xpose.msra.mxu0 0.0
        %1142 = vmatpush.xpose.msra.mxu0 0.0
        %1143 = vmatpush.xpose.msra.mxu0 0.0
        %1144 = vmatpush.xpose.msra.mxu0 0.0
        %1145 = vmatpush.xpose.msra.mxu0 0.0
        %1146 = vmatpush.xpose.msra.mxu0 0.0
        %1147 = vmatpush.xpose.msra.mxu0 0.0
        %1148 = vmatpush.xpose.msra.mxu0 0.0
        %1149 = vmatpush.xpose.msra.mxu0 0.0
        %1150 = vmatpush.xpose.msra.mxu0 0.0
        %1151 = vmatpush.xpose.msra.mxu0 %v1134
        %1152 = vmatmul.f32.gmra.mxu0 %v1132
        %v1153 = vpop.f32.mrf.mxu0
        %v1154 = vadd.f32 0.0, %v1153
        %1155 = vdwg.mxu0
        %1156 = vrot.lane.b32.xlu0 %v480, 112
        %v1157 = vpop.permute.xlu0 %1156
        %1158 = vrot.lane.b32.xlu0 %v475, 112
        %v1159 = vpop.permute.xlu0 %1158
        %v1160 = vsel %vm485, %v1157, 0
        %v1162 = vsel %vm485, %v1159, 0
        %1164 = vmatpush.xpose.msra.mxu0 0.0
        %1165 = vmatpush.xpose.msra.mxu0 0.0
        %1166 = vmatpush.xpose.msra.mxu0 0.0
        %1167 = vmatpush.xpose.msra.mxu0 0.0
        %1168 = vmatpush.xpose.msra.mxu0 0.0
        %1169 = vmatpush.xpose.msra.mxu0 0.0
        %1170 = vmatpush.xpose.msra.mxu0 0.0
        %1171 = vmatpush.xpose.msra.mxu0 0.0
        %1172 = vmatpush.xpose.msra.mxu0 0.0
        %1173 = vmatpush.xpose.msra.mxu0 0.0
        %1174 = vmatpush.xpose.msra.mxu0 0.0
        %1175 = vmatpush.xpose.msra.mxu0 0.0
        %1176 = vmatpush.xpose.msra.mxu0 0.0
        %1177 = vmatpush.xpose.msra.mxu0 0.0
        %1178 = vmatpush.xpose.msra.mxu0 0.0
        %1179 = vmatpush.xpose.msra.mxu0 %v1162
        %1180 = vmatmul.f32.gmra.mxu0 %v1160
        %v1181 = vpop.f32.mrf.mxu0
        %v1182 = vadd.f32 0.0, %v1181
        %1183 = vdwg.mxu0
        %v1184 = vsel %vm485, %v1098, -inf
        %1185 = vmax.xlane.f32.xlu0 %v1184
        %v1186 = vpop.xlane.xlu0 %1185
        %v1187 = vsel %vm485, %v1126, -inf
        %1188 = vmax.xlane.f32.xlu0 %v1187
        %v1189 = vpop.xlane.xlu0 %1188
        %v1190 = vsel %vm485, %v1154, -inf
        %1191 = vmax.xlane.f32.xlu0 %v1190
        %v1192 = vpop.xlane.xlu0 %1191
        %v1193 = vsel %vm485, %v1182, -inf
        %1194 = vmax.xlane.f32.xlu0 %v1193
        %v1195 = vpop.xlane.xlu0 %1194
        %v1196 = vsub.f32 %v1098, %v1186
        %v1197 = vsub.f32 %v1126, %v1189
        %v1198 = vsub.f32 %v1154, %v1192
        %v1199 = vsub.f32 %v1182, %v1195
        %v1200 = vmul.f32 %v1196, 1.442695
        %v1201 = vpow.pop %v1200
        %v1202 = vmul.f32 %v1197, 1.442695
        %v1203 = vpow.pop %v1202
        %v1204 = vmul.f32 %v1198, 1.442695
        %v1205 = vpow.pop %v1204
        %v1206 = vmul.f32 %v1199, 1.442695
        %v1207 = vpow.pop %v1206
        %v1208 = vsel %vm485, %v1201, 0.0
        %1209 = vadd.xlane.f32.xlu0 %v1208
        %v1210 = vpop.xlane.xlu0 %1209
        %v1211 = vsel %vm485, %v1203, 0.0
        %1212 = vadd.xlane.f32.xlu0 %v1211
        %v1213 = vpop.xlane.xlu0 %1212
        %v1214 = vsel %vm485, %v1205, 0.0
        %1215 = vadd.xlane.f32.xlu0 %v1214
        %v1216 = vpop.xlane.xlu0 %1215
        %v1217 = vsel %vm485, %v1207, 0.0
        %1218 = vadd.xlane.f32.xlu0 %v1217
        %v1219 = vpop.xlane.xlu0 %1218
        %v1220 = vrcp.pop %v1210
        %v1221 = vrcp.pop %v1213
        %v1222 = vrcp.pop %v1216
        %v1223 = vrcp.pop %v1219
        %v1224 = vmul.f32 %v1201, %v1220
        %v1225 = vmul.f32 %v1203, %v1221
        %v1226 = vmul.f32 %v1205, %v1222
        %v1227 = vmul.f32 %v1207, %v1223
        %v1228 = vadd.f32 %v839, %v1224
        %v1229 = vadd.f32 %v840, %v1225
        %v1230 = vadd.f32 %v841, %v1226
        %v1231 = vadd.f32 %v842, %v1227
        %1232 = vrot.lane.b32.xlu0 %v466, 80
        %v1233 = vpop.permute.xlu0 %1232
        %1234 = vrot.lane.b32.xlu0 %v469, 80
        %v1235 = vpop.permute.xlu0 %1234
        %1236 = vrot.lane.b32.xlu0 %v472, 80
        %v1237 = vpop.permute.xlu0 %1236
        %1238 = vrot.lane.b32.xlu0 %v475, 80
        %v1239 = vpop.permute.xlu0 %1238
        %v1240 = vsel %vm485, %v1233, 0
        %v1242 = vsel %vm485, %v1235, 0
        %v1244 = vsel %vm485, %v1237, 0
        %v1246 = vsel %vm485, %v1239, 0
        %1248 = vmatpush.msra.mxu0 0.0
        %1249 = vmatpush.msra.mxu0 0.0
        %1250 = vmatpush.msra.mxu0 0.0
        %1251 = vmatpush.msra.mxu0 0.0
        %1252 = vmatpush.msra.mxu0 0.0
        %1253 = vmatpush.msra.mxu0 0.0
        %1254 = vmatpush.msra.mxu0 0.0
        %1255 = vmatpush.msra.mxu0 0.0
        %1256 = vmatpush.msra.mxu0 0.0
        %1257 = vmatpush.msra.mxu0 0.0
        %1258 = vmatpush.msra.mxu0 0.0
        %1259 = vmatpush.msra.mxu0 0.0
        %1260 = vmatpush.msra.mxu0 0.0
        %1261 = vmatpush.msra.mxu0 0.0
        %1262 = vmatpush.msra.mxu0 0.0
        %1263 = vmatpush.msra.mxu0 %v483
        %1264 = vmatmul.f32.gmra.mxu0 %v1240
        %v1265 = vpop.f32.mrf.mxu0
        %v1266 = vadd.f32 0.0, %v1265
        %1267 = vmatmul.f32.gmra.mxu0 %v1242
        %v1268 = vpop.f32.mrf.mxu0
        %v1269 = vadd.f32 0.0, %v1268
        %1270 = vmatmul.f32.gmra.mxu0 %v1244
        %v1271 = vpop.f32.mrf.mxu0
        %v1272 = vadd.f32 0.0, %v1271
        %1273 = vmatmul.f32.gmra.mxu0 %v1246
        %v1274 = vpop.f32.mrf.mxu0
        %v1275 = vadd.f32 0.0, %v1274
        %1276 = vdwg.mxu0
        %v1278 = vsel %vm485, %v1224, 0
        %1280 = vmatpush.msra.mxu0 0.0
        %1281 = vmatpush.msra.mxu0 0.0
        %1282 = vmatpush.msra.mxu0 0.0
        %1283 = vmatpush.msra.mxu0 0.0
        %1284 = vmatpush.msra.mxu0 0.0
        %1285 = vmatpush.msra.mxu0 0.0
        %1286 = vmatpush.msra.mxu0 0.0
        %1287 = vmatpush.msra.mxu0 0.0
        %1288 = vmatpush.msra.mxu0 0.0
        %1289 = vmatpush.msra.mxu0 0.0
        %1290 = vmatpush.msra.mxu0 0.0
        %1291 = vmatpush.msra.mxu0 0.0
        %1292 = vmatpush.msra.mxu0 0.0
        %1293 = vmatpush.msra.mxu0 0.0
        %1294 = vmatpush.msra.mxu0 0.0
        %1295 = vmatpush.msra.mxu0 %v1266
        %1296 = vmatmul.f32.gmra.mxu0 %v1278
        %v1297 = vpop.f32.mrf.mxu0
        %v1298 = vadd.f32 0.0, %v1297
        %1299 = vdwg.mxu0
        %v1301 = vsel %vm485, %v1225, 0
        %1303 = vmatpush.msra.mxu0 0.0
        %1304 = vmatpush.msra.mxu0 0.0
        %1305 = vmatpush.msra.mxu0 0.0
        %1306 = vmatpush.msra.mxu0 0.0
        %1307 = vmatpush.msra.mxu0 0.0
        %1308 = vmatpush.msra.mxu0 0.0
        %1309 = vmatpush.msra.mxu0 0.0
        %1310 = vmatpush.msra.mxu0 0.0
        %1311 = vmatpush.msra.mxu0 0.0
        %1312 = vmatpush.msra.mxu0 0.0
        %1313 = vmatpush.msra.mxu0 0.0
        %1314 = vmatpush.msra.mxu0 0.0
        %1315 = vmatpush.msra.mxu0 0.0
        %1316 = vmatpush.msra.mxu0 0.0
        %1317 = vmatpush.msra.mxu0 0.0
        %1318 = vmatpush.msra.mxu0 %v1269
        %1319 = vmatmul.f32.gmra.mxu0 %v1301
        %v1320 = vpop.f32.mrf.mxu0
        %v1321 = vadd.f32 0.0, %v1320
        %1322 = vdwg.mxu0
        %v1324 = vsel %vm485, %v1226, 0
        %1326 = vmatpush.msra.mxu0 0.0
        %1327 = vmatpush.msra.mxu0 0.0
        %1328 = vmatpush.msra.mxu0 0.0
        %1329 = vmatpush.msra.mxu0 0.0
        %1330 = vmatpush.msra.mxu0 0.0
        %1331 = vmatpush.msra.mxu0 0.0
        %1332 = vmatpush.msra.mxu0 0.0
        %1333 = vmatpush.msra.mxu0 0.0
        %1334 = vmatpush.msra.mxu0 0.0
        %1335 = vmatpush.msra.mxu0 0.0
        %1336 = vmatpush.msra.mxu0 0.0
        %1337 = vmatpush.msra.mxu0 0.0
        %1338 = vmatpush.msra.mxu0 0.0
        %1339 = vmatpush.msra.mxu0 0.0
        %1340 = vmatpush.msra.mxu0 0.0
        %1341 = vmatpush.msra.mxu0 %v1272
        %1342 = vmatmul.f32.gmra.mxu0 %v1324
        %v1343 = vpop.f32.mrf.mxu0
        %v1344 = vadd.f32 0.0, %v1343
        %1345 = vdwg.mxu0
        %v1347 = vsel %vm485, %v1227, 0
        %1349 = vmatpush.msra.mxu0 0.0
        %1350 = vmatpush.msra.mxu0 0.0
        %1351 = vmatpush.msra.mxu0 0.0
        %1352 = vmatpush.msra.mxu0 0.0
        %1353 = vmatpush.msra.mxu0 0.0
        %1354 = vmatpush.msra.mxu0 0.0
        %1355 = vmatpush.msra.mxu0 0.0
        %1356 = vmatpush.msra.mxu0 0.0
        %1357 = vmatpush.msra.mxu0 0.0
        %1358 = vmatpush.msra.mxu0 0.0
        %1359 = vmatpush.msra.mxu0 0.0
        %1360 = vmatpush.msra.mxu0 0.0
        %1361 = vmatpush.msra.mxu0 0.0
        %1362 = vmatpush.msra.mxu0 0.0
        %1363 = vmatpush.msra.mxu0 0.0
        %1364 = vmatpush.msra.mxu0 %v1275
        %1365 = vmatmul.f32.gmra.mxu0 %v1347
        %v1366 = vpop.f32.mrf.mxu0
        %v1367 = vadd.f32 0.0, %v1366
        %1368 = vdwg.mxu0
        %v1369 = vadd.f32 %v1001, %v1298
        %v1370 = vadd.f32 %v1024, %v1321
        %v1371 = vadd.f32 %v1047, %v1344
        %v1372 = vadd.f32 %v1070, %v1367
        %1373 = vrot.lane.b32.xlu0 %v477, 104
        %v1374 = vpop.permute.xlu0 %1373
        %1375 = vrot.lane.b32.xlu0 %v466, 104
        %v1376 = vpop.permute.xlu0 %1375
        %v1377 = vsel %vm485, %v1374, 0
        %v1379 = vsel %vm485, %v1376, 0
        %1381 = vmatpush.xpose.msra.mxu0 0.0
        %1382 = vmatpush.xpose.msra.mxu0 0.0
        %1383 = vmatpush.xpose.msra.mxu0 0.0
        %1384 = vmatpush.xpose.msra.mxu0 0.0
        %1385 = vmatpush.xpose.msra.mxu0 0.0
        %1386 = vmatpush.xpose.msra.mxu0 0.0
        %1387 = vmatpush.xpose.msra.mxu0 0.0
        %1388 = vmatpush.xpose.msra.mxu0 0.0
        %1389 = vmatpush.xpose.msra.mxu0 0.0
        %1390 = vmatpush.xpose.msra.mxu0 0.0
        %1391 = vmatpush.xpose.msra.mxu0 0.0
        %1392 = vmatpush.xpose.msra.mxu0 0.0
        %1393 = vmatpush.xpose.msra.mxu0 0.0
        %1394 = vmatpush.xpose.msra.mxu0 0.0
        %1395 = vmatpush.xpose.msra.mxu0 0.0
        %1396 = vmatpush.xpose.msra.mxu0 %v1379
        %1397 = vmatmul.f32.gmra.mxu0 %v1377
        %v1398 = vpop.f32.mrf.mxu0
        %v1399 = vadd.f32 0.0, %v1398
        %1400 = vdwg.mxu0
        %1401 = vrot.lane.b32.xlu0 %v478, 104
        %v1402 = vpop.permute.xlu0 %1401
        %1403 = vrot.lane.b32.xlu0 %v469, 104
        %v1404 = vpop.permute.xlu0 %1403
        %v1405 = vsel %vm485, %v1402, 0
        %v1407 = vsel %vm485, %v1404, 0
        %1409 = vmatpush.xpose.msra.mxu0 0.0
        %1410 = vmatpush.xpose.msra.mxu0 0.0
        %1411 = vmatpush.xpose.msra.mxu0 0.0
        %1412 = vmatpush.xpose.msra.mxu0 0.0
        %1413 = vmatpush.xpose.msra.mxu0 0.0
        %1414 = vmatpush.xpose.msra.mxu0 0.0
        %1415 = vmatpush.xpose.msra.mxu0 0.0
        %1416 = vmatpush.xpose.msra.mxu0 0.0
        %1417 = vmatpush.xpose.msra.mxu0 0.0
        %1418 = vmatpush.xpose.msra.mxu0 0.0
        %1419 = vmatpush.xpose.msra.mxu0 0.0
        %1420 = vmatpush.xpose.msra.mxu0 0.0
        %1421 = vmatpush.xpose.msra.mxu0 0.0
        %1422 = vmatpush.xpose.msra.mxu0 0.0
        %1423 = vmatpush.xpose.msra.mxu0 0.0
        %1424 = vmatpush.xpose.msra.mxu0 %v1407
        %1425 = vmatmul.f32.gmra.mxu0 %v1405
        %v1426 = vpop.f32.mrf.mxu0
        %v1427 = vadd.f32 0.0, %v1426
        %1428 = vdwg.mxu0
        %1429 = vrot.lane.b32.xlu0 %v479, 104
        %v1430 = vpop.permute.xlu0 %1429
        %1431 = vrot.lane.b32.xlu0 %v472, 104
        %v1432 = vpop.permute.xlu0 %1431
        %v1433 = vsel %vm485, %v1430, 0
        %v1435 = vsel %vm485, %v1432, 0
        %1437 = vmatpush.xpose.msra.mxu0 0.0
        %1438 = vmatpush.xpose.msra.mxu0 0.0
        %1439 = vmatpush.xpose.msra.mxu0 0.0
        %1440 = vmatpush.xpose.msra.mxu0 0.0
        %1441 = vmatpush.xpose.msra.mxu0 0.0
        %1442 = vmatpush.xpose.msra.mxu0 0.0
        %1443 = vmatpush.xpose.msra.mxu0 0.0
        %1444 = vmatpush.xpose.msra.mxu0 0.0
        %1445 = vmatpush.xpose.msra.mxu0 0.0
        %1446 = vmatpush.xpose.msra.mxu0 0.0
        %1447 = vmatpush.xpose.msra.mxu0 0.0
        %1448 = vmatpush.xpose.msra.mxu0 0.0
        %1449 = vmatpush.xpose.msra.mxu0 0.0
        %1450 = vmatpush.xpose.msra.mxu0 0.0
        %1451 = vmatpush.xpose.msra.mxu0 0.0
        %1452 = vmatpush.xpose.msra.mxu0 %v1435
        %1453 = vmatmul.f32.gmra.mxu0 %v1433
        %v1454 = vpop.f32.mrf.mxu0
        %v1455 = vadd.f32 0.0, %v1454
        %1456 = vdwg.mxu0
        %1457 = vrot.lane.b32.xlu0 %v480, 104
        %v1458 = vpop.permute.xlu0 %1457
        %1459 = vrot.lane.b32.xlu0 %v475, 104
        %v1460 = vpop.permute.xlu0 %1459
        %v1461 = vsel %vm485, %v1458, 0
        %v1463 = vsel %vm485, %v1460, 0
        %1465 = vmatpush.xpose.msra.mxu0 0.0
        %1466 = vmatpush.xpose.msra.mxu0 0.0
        %1467 = vmatpush.xpose.msra.mxu0 0.0
        %1468 = vmatpush.xpose.msra.mxu0 0.0
        %1469 = vmatpush.xpose.msra.mxu0 0.0
        %1470 = vmatpush.xpose.msra.mxu0 0.0
        %1471 = vmatpush.xpose.msra.mxu0 0.0
        %1472 = vmatpush.xpose.msra.mxu0 0.0
        %1473 = vmatpush.xpose.msra.mxu0 0.0
        %1474 = vmatpush.xpose.msra.mxu0 0.0
        %1475 = vmatpush.xpose.msra.mxu0 0.0
        %1476 = vmatpush.xpose.msra.mxu0 0.0
        %1477 = vmatpush.xpose.msra.mxu0 0.0
        %1478 = vmatpush.xpose.msra.mxu0 0.0
        %1479 = vmatpush.xpose.msra.mxu0 0.0
        %1480 = vmatpush.xpose.msra.mxu0 %v1463
        %1481 = vmatmul.f32.gmra.mxu0 %v1461
        %v1482 = vpop.f32.mrf.mxu0
        %v1483 = vadd.f32 0.0, %v1482
        %1484 = vdwg.mxu0
        %v1485 = vsel %vm485, %v1399, -inf
        %1486 = vmax.xlane.f32.xlu0 %v1485
        %v1487 = vpop.xlane.xlu0 %1486
        %v1488 = vsel %vm485, %v1427, -inf
        %1489 = vmax.xlane.f32.xlu0 %v1488
        %v1490 = vpop.xlane.xlu0 %1489
        %v1491 = vsel %vm485, %v1455, -inf
        %1492 = vmax.xlane.f32.xlu0 %v1491
        %v1493 = vpop.xlane.xlu0 %1492
        %v1494 = vsel %vm485, %v1483, -inf
        %1495 = vmax.xlane.f32.xlu0 %v1494
        %v1496 = vpop.xlane.xlu0 %1495
        %v1497 = vsub.f32 %v1399, %v1487
        %v1498 = vsub.f32 %v1427, %v1490
        %v1499 = vsub.f32 %v1455, %v1493
        %v1500 = vsub.f32 %v1483, %v1496
        %v1501 = vmul.f32 %v1497, 1.442695
        %v1502 = vpow.pop %v1501
        %v1503 = vmul.f32 %v1498, 1.442695
        %v1504 = vpow.pop %v1503
        %v1505 = vmul.f32 %v1499, 1.442695
        %v1506 = vpow.pop %v1505
        %v1507 = vmul.f32 %v1500, 1.442695
        %v1508 = vpow.pop %v1507
        %v1509 = vsel %vm485, %v1502, 0.0
        %1510 = vadd.xlane.f32.xlu0 %v1509
        %v1511 = vpop.xlane.xlu0 %1510
        %v1512 = vsel %vm485, %v1504, 0.0
        %1513 = vadd.xlane.f32.xlu0 %v1512
        %v1514 = vpop.xlane.xlu0 %1513
        %v1515 = vsel %vm485, %v1506, 0.0
        %1516 = vadd.xlane.f32.xlu0 %v1515
        %v1517 = vpop.xlane.xlu0 %1516
        %v1518 = vsel %vm485, %v1508, 0.0
        %1519 = vadd.xlane.f32.xlu0 %v1518
        %v1520 = vpop.xlane.xlu0 %1519
        %v1521 = vrcp.pop %v1511
        %v1522 = vrcp.pop %v1514
        %v1523 = vrcp.pop %v1517
        %v1524 = vrcp.pop %v1520
        %v1525 = vmul.f32 %v1502, %v1521
        %v1526 = vmul.f32 %v1504, %v1522
        %v1527 = vmul.f32 %v1506, %v1523
        %v1528 = vmul.f32 %v1508, %v1524
        %v1529 = vadd.f32 %v1228, %v1525
        %v1530 = vadd.f32 %v1229, %v1526
        %v1531 = vadd.f32 %v1230, %v1527
        %v1532 = vadd.f32 %v1231, %v1528
        %1533 = vrot.lane.b32.xlu0 %v466, 72
        %v1534 = vpop.permute.xlu0 %1533
        %1535 = vrot.lane.b32.xlu0 %v469, 72
        %v1536 = vpop.permute.xlu0 %1535
        %1537 = vrot.lane.b32.xlu0 %v472, 72
        %v1538 = vpop.permute.xlu0 %1537
        %1539 = vrot.lane.b32.xlu0 %v475, 72
        %v1540 = vpop.permute.xlu0 %1539
        %v1541 = vsel %vm485, %v1534, 0
        %v1543 = vsel %vm485, %v1536, 0
        %v1545 = vsel %vm485, %v1538, 0
        %v1547 = vsel %vm485, %v1540, 0
        %1549 = vmatpush.msra.mxu0 0.0
        %1550 = vmatpush.msra.mxu0 0.0
        %1551 = vmatpush.msra.mxu0 0.0
        %1552 = vmatpush.msra.mxu0 0.0
        %1553 = vmatpush.msra.mxu0 0.0
        %1554 = vmatpush.msra.mxu0 0.0
        %1555 = vmatpush.msra.mxu0 0.0
        %1556 = vmatpush.msra.mxu0 0.0
        %1557 = vmatpush.msra.mxu0 0.0
        %1558 = vmatpush.msra.mxu0 0.0
        %1559 = vmatpush.msra.mxu0 0.0
        %1560 = vmatpush.msra.mxu0 0.0
        %1561 = vmatpush.msra.mxu0 0.0
        %1562 = vmatpush.msra.mxu0 0.0
        %1563 = vmatpush.msra.mxu0 0.0
        %1564 = vmatpush.msra.mxu0 %v484
        %1565 = vmatmul.f32.gmra.mxu0 %v1541
        %v1566 = vpop.f32.mrf.mxu0
        %v1567 = vadd.f32 0.0, %v1566
        %1568 = vmatmul.f32.gmra.mxu0 %v1543
        %v1569 = vpop.f32.mrf.mxu0
        %v1570 = vadd.f32 0.0, %v1569
        %1571 = vmatmul.f32.gmra.mxu0 %v1545
        %v1572 = vpop.f32.mrf.mxu0
        %v1573 = vadd.f32 0.0, %v1572
        %1574 = vmatmul.f32.gmra.mxu0 %v1547
        %v1575 = vpop.f32.mrf.mxu0
        %v1576 = vadd.f32 0.0, %v1575
        %1577 = vdwg.mxu0
        %v1579 = vsel %vm485, %v1525, 0
        %1581 = vmatpush.msra.mxu0 0.0
        %1582 = vmatpush.msra.mxu0 0.0
        %1583 = vmatpush.msra.mxu0 0.0
        %1584 = vmatpush.msra.mxu0 0.0
        %1585 = vmatpush.msra.mxu0 0.0
        %1586 = vmatpush.msra.mxu0 0.0
        %1587 = vmatpush.msra.mxu0 0.0
        %1588 = vmatpush.msra.mxu0 0.0
        %1589 = vmatpush.msra.mxu0 0.0
        %1590 = vmatpush.msra.mxu0 0.0
        %1591 = vmatpush.msra.mxu0 0.0
        %1592 = vmatpush.msra.mxu0 0.0
        %1593 = vmatpush.msra.mxu0 0.0
        %1594 = vmatpush.msra.mxu0 0.0
        %1595 = vmatpush.msra.mxu0 0.0
        %1596 = vmatpush.msra.mxu0 %v1567
        %1597 = vmatmul.f32.gmra.mxu0 %v1579
        %v1598 = vpop.f32.mrf.mxu0
        %v1599 = vadd.f32 0.0, %v1598
        %1600 = vdwg.mxu0
        %v1602 = vsel %vm485, %v1526, 0
        %1604 = vmatpush.msra.mxu0 0.0
        %1605 = vmatpush.msra.mxu0 0.0
        %1606 = vmatpush.msra.mxu0 0.0
        %1607 = vmatpush.msra.mxu0 0.0
        %1608 = vmatpush.msra.mxu0 0.0
        %1609 = vmatpush.msra.mxu0 0.0
        %1610 = vmatpush.msra.mxu0 0.0
        %1611 = vmatpush.msra.mxu0 0.0
        %1612 = vmatpush.msra.mxu0 0.0
        %1613 = vmatpush.msra.mxu0 0.0
        %1614 = vmatpush.msra.mxu0 0.0
        %1615 = vmatpush.msra.mxu0 0.0
        %1616 = vmatpush.msra.mxu0 0.0
        %1617 = vmatpush.msra.mxu0 0.0
        %1618 = vmatpush.msra.mxu0 0.0
        %1619 = vmatpush.msra.mxu0 %v1570
        %1620 = vmatmul.f32.gmra.mxu0 %v1602
        %v1621 = vpop.f32.mrf.mxu0
        %v1622 = vadd.f32 0.0, %v1621
        %1623 = vdwg.mxu0
        %v1625 = vsel %vm485, %v1527, 0
        %1627 = vmatpush.msra.mxu0 0.0
        %1628 = vmatpush.msra.mxu0 0.0
        %1629 = vmatpush.msra.mxu0 0.0
        %1630 = vmatpush.msra.mxu0 0.0
        %1631 = vmatpush.msra.mxu0 0.0
        %1632 = vmatpush.msra.mxu0 0.0
        %1633 = vmatpush.msra.mxu0 0.0
        %1634 = vmatpush.msra.mxu0 0.0
        %1635 = vmatpush.msra.mxu0 0.0
        %1636 = vmatpush.msra.mxu0 0.0
        %1637 = vmatpush.msra.mxu0 0.0
        %1638 = vmatpush.msra.mxu0 0.0
        %1639 = vmatpush.msra.mxu0 0.0
        %1640 = vmatpush.msra.mxu0 0.0
        %1641 = vmatpush.msra.mxu0 0.0
        %1642 = vmatpush.msra.mxu0 %v1573
        %1643 = vmatmul.f32.gmra.mxu0 %v1625
        %v1644 = vpop.f32.mrf.mxu0
        %v1645 = vadd.f32 0.0, %v1644
        %1646 = vdwg.mxu0
        %v1648 = vsel %vm485, %v1528, 0
        %1650 = vmatpush.msra.mxu0 0.0
        %1651 = vmatpush.msra.mxu0 0.0
        %1652 = vmatpush.msra.mxu0 0.0
        %1653 = vmatpush.msra.mxu0 0.0
        %1654 = vmatpush.msra.mxu0 0.0
        %1655 = vmatpush.msra.mxu0 0.0
        %1656 = vmatpush.msra.mxu0 0.0
        %1657 = vmatpush.msra.mxu0 0.0
        %1658 = vmatpush.msra.mxu0 0.0
        %1659 = vmatpush.msra.mxu0 0.0
        %1660 = vmatpush.msra.mxu0 0.0
        %1661 = vmatpush.msra.mxu0 0.0
        %1662 = vmatpush.msra.mxu0 0.0
        %1663 = vmatpush.msra.mxu0 0.0
        %1664 = vmatpush.msra.mxu0 0.0
        %1665 = vmatpush.msra.mxu0 %v1576
        %1666 = vmatmul.f32.gmra.mxu0 %v1648
        %v1667 = vpop.f32.mrf.mxu0
        %v1668 = vadd.f32 0.0, %v1667
        %1669 = vdwg.mxu0
        %v1670 = vadd.f32 %v1369, %v1599
        %v1671 = vadd.f32 %v1370, %v1622
        %v1672 = vadd.f32 %v1371, %v1645
        %v1673 = vadd.f32 %v1372, %v1668
        %v1674 = vld [vmem:[%s7] sm:$0x1]
        %v1676 = vperm.slane %v1674, 0
        %v1678 = vadd.f32 %v1670, %v1676
        %v1679 = vadd.f32 %v1671, %v1676
        %v1680 = vadd.f32 %v1672, %v1676
        %v1681 = vadd.f32 %v1673, %v1676
        %1682 = vst.msk [vmem:[%s367] sm:$0xff] %vm386, %v1678
        %1683 = vst.msk [vmem:[%s367 + $0x8] sm:$0xff] %vm386, %v1679
        %1684 = vst.msk [vmem:[%s367 + $0x10] sm:$0xff] %vm386, %v1680
        %1685 = vst.msk [vmem:[%s367 + $0x18] sm:$0xff] %vm386, %v1681
        %v1686 = vmul.f32 %v1529, 0.25
        %v1687 = vmul.f32 %v1530, 0.25
        %v1688 = vmul.f32 %v1531, 0.25
        %v1689 = vmul.f32 %v1532, 0.25
        %1690 = vst.msk [vmem:[%s350] sm:$0xff] %vm485, %v1686
        %1691 = vst.msk [vmem:[%s350 + $0x8] sm:$0xff] %vm485, %v1687
        %1692 = vst.msk [vmem:[%s350 + $0x10] sm:$0xff] %vm485, %v1688
        %1693 = vst.msk [vmem:[%s350 + $0x18] sm:$0xff] %vm485, %v1689
        %s1694 = smul.u32 4, %s24
        %p1695 = scmp.lt.s32.totalorder %s1694, 7
        %s1696 = scalar_select %p1695, %s1694, 7
        %s1697 = smul.addr %s1696, 8
        %s1698 = scalar_lea.vmem %s8, %s1697
        %s1699 = sand.u32 %s236, 1
        %s1700 = scalar_lea.sflag [#allocation3], %s1699
        %s1701 = sand.u32 %s236, 1
        %s1702 = smul.addr %s1701, 32
        %s1703 = scalar_lea.vmem [#allocation2], %s1702
        // Predicated region
        $region53: #{tpu_custom_call.1} parent=51 // pred_check
          %p1704 = pneg %p220
        $region54: #{tpu_custom_call.1} parent=51 // pred_check_branch
          %1706 = sbr.rel (%p1704) target = $region56
        $region55: #{tpu_custom_call.1} parent=51 // pred_region
          %s1707 = smul.u32 4, %s24
        $region56: #{tpu_custom_call.1} parent=51 // pred_fallthru
          _
        // Predicated region
        $region57: #{tpu_custom_call.1} parent=51 // pred_check
          %p1708 = pneg %p246
        $region58: #{tpu_custom_call.1} parent=51 // pred_check_branch
          %1710 = sbr.rel (%p1708) target = $region60
        $region59: #{tpu_custom_call.1} parent=51 // pred_region
          %s1711 = smul.u32 4, %s24
          %1713 = vsyncadd %s1700, 0
          %s1714 = smul.addr %s1711, 8
          %s1715 = scalar_lea.hbm %s9, %s1714
          %s1716 = sshll.u32 %s1703, 4
          %s1717 = int_to_ptr.vmem [resolvable:$true] %s1716
          %s1718 = sshll.u32 %s1715, 4
          %s1719 = int_to_ptr.hbm [resolvable:$true] %s1718
          %1724 = dma.vmem_to_hbm [thread:$0]  %s1717, 512, %s1719, %s1700, 128, 128, 8
        $region60: #{tpu_custom_call.1} parent=51 // pred_fallthru
          _
      $region52: #{tpu_custom_call.1} parent=5 // pred_fallthru
        _
      %p1725 = scmp.le.s32.totalorder 2, %s19
      // Predicated region
      $region61: #{tpu_custom_call.1} parent=5 // pred_check
        %p1726 = pneg %p1725
      $region62: #{tpu_custom_call.1} parent=5 // pred_check_branch
        %1728 = sbr.rel (%p1726) target = $region64
      $region63: #{tpu_custom_call.1} parent=5 // pred_region
        %s1729 = ssub.s32 %s19, 2
        // Predicated region
        $region65: #{tpu_custom_call.1} parent=63 // pred_check
          %p1730 = pneg %p226
        $region66: #{tpu_custom_call.1} parent=63 // pred_check_branch
          %1732 = sbr.rel (%p1730) target = $region68
        $region67: #{tpu_custom_call.1} parent=63 // pred_region
          %s1733 = smul.u32 4, %s25
          %p1734 = scmp.lt.s32.totalorder %s1733, 7
          %s1735 = scalar_select %p1734, %s1733, 7
          %s1736 = smul.addr %s1735, 8
          %s1737 = scalar_lea.vmem %s8, %s1736
        $region68: #{tpu_custom_call.1} parent=63 // pred_fallthru
          _
        // Predicated region
        $region69: #{tpu_custom_call.1} parent=63 // pred_check
          %p1738 = pneg %p252
        $region70: #{tpu_custom_call.1} parent=63 // pred_check_branch
          %1740 = sbr.rel (%p1738) target = $region72
        $region71: #{tpu_custom_call.1} parent=63 // pred_region
          %s1741 = sand.u32 %s237, 1
          %s1742 = scalar_lea.sflag [#allocation3], %s1741
          %s1743 = sand.u32 %s237, 1
          %s1744 = smul.addr %s1743, 32
          %s1745 = scalar_lea.vmem [#allocation2], %s1744
          %1747 = dma.done %s1742, 512
        $region72: #{tpu_custom_call.1} parent=63 // pred_fallthru
          _
      $region64: #{tpu_custom_call.1} parent=5 // pred_fallthru
        _
    $region6: #{tpu_custom_call.1} parent=1 // loop_footer
      %s23 = sadd.s32 1, %s19
    $region7: #{tpu_custom_call.1} parent=1 // loop_footer_branch
      %18 = sbr.rel target = $region3
    $region8: #{tpu_custom_call.1} parent=1 // loop_exit
      _
    %1748 = vsyncpa [#allocation3], 1
    %s1749 = scalar_lea.sflag [#allocation3], 1
    %1750 = vsyncpa %s1749, 1

</llo_original>
